<compile_context>
chip_gen: v5e
topology: v5e:2x2
jax: 0.10.0
libtpu: 0.0.40
codegen_flags: <defaults>
</compile_context>

<pallas_src>
import functools

import jax
import jax.numpy as jnp
from jax.experimental import pallas as pl
from jax.experimental.pallas import tpu as pltpu

PAD = 0  # padding_idx of the word embedding table


def _embeddings_kernel(ids_ref, word_hbm, pos_ref, mode_ref, gamma_ref,
                       beta_ref, out_ref, word_buf, sems, *, eps, tm):
    # ids_ref:   (B*S,) int32 in SMEM (scalar prefetch)
    # word_hbm:  (V, H) raw HBM ref (memory_space=pl.ANY)
    # pos_ref:   (tm, H) VMEM tile       mode_ref: (tm, H) VMEM tile
    # gamma_ref / beta_ref: (1, H) VMEM tiles (constant index -> no re-DMA)
    # out_ref:   (tm, H) VMEM tile
    # word_buf:  (2*tm, H) VMEM scratch (two gather slots)
    # sems:      (2*tm,) DMA semaphores (one per in-flight row copy)
    i = pl.program_id(0)
    n = pl.num_programs(0)
    slot = i & 1

    def issue_gather(block_idx, slot_):
        base = block_idx * tm
        for r in range(tm):
            tok = ids_ref[base + r]
            pltpu.make_async_copy(
                word_hbm.at[pl.ds(tok, 1)],
                word_buf.at[pl.ds(slot_ * tm + r, 1)],
                sems.at[slot_ * tm + r],
            ).start()

    def wait_gather(slot_):
        for r in range(tm):
            pltpu.make_async_copy(
                word_hbm.at[pl.ds(0, 1)],                     # dummy src, same size
                word_buf.at[pl.ds(slot_ * tm + r, 1)],
                sems.at[slot_ * tm + r],
            ).wait()

    # Prime the gather pipeline on the first grid step.
    @pl.when(i == 0)
    def _():
        issue_gather(0, 0)

    # Prefetch next block's word rows into the other slot so the gather DMAs
    # overlap with this block's wait + compute.
    @pl.when(i + 1 < n)
    def _():
        issue_gather(i + 1, 1 - slot)

    wait_gather(slot)

    start = pl.multiple_of(slot * tm, tm)
    word = word_buf[pl.ds(start, tm), :].astype(jnp.float32)          # (tm, H)
    x = word + pos_ref[...].astype(jnp.float32) + mode_ref[...].astype(jnp.float32)

    # LayerNorm over the hidden dim (stats in f32).
    mean = jnp.mean(x, axis=-1, keepdims=True)
    centered = x - mean
    var = jnp.mean(centered * centered, axis=-1, keepdims=True)
    xhat = centered * jax.lax.rsqrt(var + eps)
    out = xhat * gamma_ref[...].astype(jnp.float32) + beta_ref[...].astype(jnp.float32)
    out_ref[...] = out.astype(out_ref.dtype)
    # TODO(synk): training-mode dropout (hidden_dropout_prob) not applied;
    # eval-mode dropout is the identity.
    # TODO(synk): for H < 128 the output stores are masked (partial-lane); a
    # lane-dense repack of the out tile would help, irrelevant for BERT H=768.


def _pick_tm(seq_len, max_tm=64):
    # Largest multiple of 8 that divides S (keeps position blocks contiguous)
    # and is small enough to bound in-flight gather DMAs / semaphores.
    cands = [t for t in range(8, min(seq_len, max_tm) + 1, 8) if seq_len % t == 0]
    if not cands:
        raise ValueError("sequence length must be a multiple of 8")
    return max(cands)


def embeddings_forward(input_ids, mode_embeds, word_table, pos_table,
                       gamma, beta, eps=1e-12):
    B, S = input_ids.shape
    V, H = word_table.shape
    P = pos_table.shape[0]
    assert S <= P, "sequence length exceeds max_position_embeddings"

    TM = _pick_tm(S)
    n_tok = B * S
    num_blocks = n_tok // TM
    blocks_per_seq = S // TM

    ids_flat = input_ids.reshape(-1).astype(jnp.int32)        # (B*S,) -> SMEM
    mode2 = mode_embeds.reshape(n_tok, H)
    g2 = gamma.reshape(1, H)
    b2 = beta.reshape(1, H)

    grid_spec = pltpu.PrefetchScalarGridSpec(
        num_scalar_prefetch=1,            # ids_flat -> SMEM, visible in kernel
        grid=(num_blocks,),
        in_specs=[
            # Word table stays in HBM; rows are gathered manually via DMA.
            pl.BlockSpec(memory_space=pl.ANY),
            # Position embeddings: contiguous (TM, H) tile per block.
            pl.BlockSpec((TM, H), lambda i, ids: (i % blocks_per_seq, 0)),
            # Mode embeddings for this block of tokens.
            pl.BlockSpec((TM, H), lambda i, ids: (i, 0)),
            # LayerNorm gamma / beta (constant index -> DMA'd once).
            pl.BlockSpec((1, H), lambda i, ids: (0, 0)),
            pl.BlockSpec((1, H), lambda i, ids: (0, 0)),
        ],
        out_specs=pl.BlockSpec((TM, H), lambda i, ids: (i, 0)),
        scratch_shapes=[
            pltpu.VMEM((2 * TM, H), word_table.dtype),     # gather double-buffer
            pltpu.SemaphoreType.DMA((2 * TM,)),            # one sem per row copy
        ],
    )

    out = pl.pallas_call(
        functools.partial(_embeddings_kernel, eps=eps, tm=TM),
        grid_spec=grid_spec,
        out_shape=jax.ShapeDtypeStruct((n_tok, H), mode_embeds.dtype),
        compiler_params=pltpu.CompilerParams(
            dimension_semantics=("arbitrary",)),
    )(ids_flat, word_table, pos_table, mode2, g2, b2)

    return out.reshape(B, S, H)


def _reference(input_ids, mode_embeds, word_table, pos_table, gamma, beta,
               eps=1e-12):
    B, S = input_ids.shape
    inputs_embeds = word_table[input_ids]                 # (B, S, H)
    position_embeds = pos_table[jnp.arange(S)][None]      # (1, S, H)
    x = inputs_embeds + position_embeds + mode_embeds
    mean = jnp.mean(x, axis=-1, keepdims=True)
    var = jnp.mean((x - mean) ** 2, axis=-1, keepdims=True)
    return (x - mean) * jax.lax.rsqrt(var + eps) * gamma + beta


if __name__ == "__main__":
    # Small synthetic config: vocab=50, hidden=32, max_position_embeddings=512.
    B, S, H, V, MAXPOS = 2, 8, 32, 50, 512
    eps = 1e-12

    key = jax.random.PRNGKey(0)
    k_word, k_pos, k_mode, k_ids = jax.random.split(key, 4)

    word_table = 0.02 * jax.random.normal(k_word, (V, H), jnp.float32)
    word_table = word_table.at[PAD].set(0.0)              # padding_idx row = 0
    pos_table = 0.02 * jax.random.normal(k_pos, (MAXPOS, H), jnp.float32)
    gamma = jnp.ones((H,), jnp.float32)
    beta = jnp.zeros((H,), jnp.float32)

    input_ids = jax.random.randint(k_ids, (B, S), 0, V, dtype=jnp.int32)
    mode_embeds = 0.02 * jax.random.normal(k_mode, (B, S, H), jnp.float32)

    out = embeddings_forward(input_ids, mode_embeds, word_table, pos_table,
                             gamma, beta, eps)
    out = jax.block_until_ready(out)

    ref = _reference(input_ids, mode_embeds, word_table, pos_table,
                     gamma, beta, eps)
    assert out.shape == (B, S, H)
    assert jnp.allclose(out, ref, atol=1e-5, rtol=1e-5), "mismatch vs reference"

    print("KERNEL_OK")
</pallas_src>

<mosaic_0001>
module attributes {stable_mosaic.version = 11 : i64} {
  func.func @_embeddings_kernel(%arg0: i32, %arg1: memref<16xi32, #tpu.memory_space<smem>>, %arg2: memref<50x32xf32, #tpu.memory_space<any>>, %arg3: memref<8x32xf32, #tpu.memory_space<vmem>>, %arg4: memref<8x32xf32, #tpu.memory_space<vmem>>, %arg5: memref<1x32xf32, #tpu.memory_space<vmem>>, %arg6: memref<1x32xf32, #tpu.memory_space<vmem>>, %arg7: memref<8x32xf32, #tpu.memory_space<vmem>>, %arg8: memref<16x32xf32, #tpu.memory_space<vmem>>, %arg9: memref<16x!tpu.dma_semaphore, #tpu.memory_space<semaphore_mem>>) attributes {dimension_semantics = [#tpu.dimension_semantics<arbitrary>], iteration_bounds = array<i64: 2>, scalar_prefetch = 1 : i64, scratch_operands = 2 : i64, tpu.core_type = #tpu.core_type<tc>, window_params = [{}, {transform_indices = @transform_1, window_bounds = array<i64: 8, 32>}, {transform_indices = @transform_2, window_bounds = array<i64: 8, 32>}, {pipeline_mode = #tpu.pipeline_mode<synchronous>, transform_indices = @transform_3, window_bounds = array<i64: 1, 32>}, {pipeline_mode = #tpu.pipeline_mode<synchronous>, transform_indices = @transform_4, window_bounds = array<i64: 1, 32>}, {transform_indices = @transform_5, window_bounds = array<i64: 8, 32>}]} {
    %c1_i32 = arith.constant 1 : i32
    %0 = arith.andi %arg0, %c1_i32 : i32
    %c0_i32 = arith.constant 0 : i32
    %1 = arith.cmpi eq, %arg0, %c0_i32 : i32
    %2 = arith.extui %1 : i1 to i32
    %c0_i32_0 = arith.constant 0 : i32
    %3 = arith.cmpi ne, %2, %c0_i32_0 : i32
    scf.if %3 {
      %c0_68 = arith.constant 0 : index
      %103 = memref.load %arg1[%c0_68] : memref<16xi32, #tpu.memory_space<smem>>
      %c0_i32_69 = arith.constant 0 : i32
      %c0_i32_70 = arith.constant 0 : i32
      %104 = tpu.memref_slice %arg2[%103, %c0_i32_70] : memref<50x32xf32, #tpu.memory_space<any>> -> memref<1x32xf32, #tpu.memory_space<any>>
      %c0_i32_71 = arith.constant 0 : i32
      %c0_i32_72 = arith.constant 0 : i32
      %105 = tpu.memref_slice %arg8[%c0_i32_71, %c0_i32_72] : memref<16x32xf32, #tpu.memory_space<vmem>> -> memref<1x32xf32, #tpu.memory_space<vmem>>
      %106 = tpu.memref_slice %arg9[%c0_i32_69] : memref<16x!tpu.dma_semaphore, #tpu.memory_space<semaphore_mem>> -> memref<1x!tpu.dma_semaphore, #tpu.memory_space<semaphore_mem>>
      %107 = tpu.memref_squeeze %106 : memref<1x!tpu.dma_semaphore, #tpu.memory_space<semaphore_mem>> -> memref<!tpu.dma_semaphore, #tpu.memory_space<semaphore_mem>>
      tpu.enqueue_dma source(%104 : memref<1x32xf32, #tpu.memory_space<any>>) target(%105 : memref<1x32xf32, #tpu.memory_space<vmem>>) target_semaphore(%107 : memref<!tpu.dma_semaphore, #tpu.memory_space<semaphore_mem>>)
      %c1 = arith.constant 1 : index
      %108 = memref.load %arg1[%c1] : memref<16xi32, #tpu.memory_space<smem>>
      %c1_i32_73 = arith.constant 1 : i32
      %c0_i32_74 = arith.constant 0 : i32
      %109 = tpu.memref_slice %arg2[%108, %c0_i32_74] : memref<50x32xf32, #tpu.memory_space<any>> -> memref<1x32xf32, #tpu.memory_space<any>>
      %c1_i32_75 = arith.constant 1 : i32
      %c0_i32_76 = arith.constant 0 : i32
      %110 = tpu.memref_slice %arg8[%c1_i32_75, %c0_i32_76] : memref<16x32xf32, #tpu.memory_space<vmem>> -> memref<1x32xf32, #tpu.memory_space<vmem>>
      %111 = tpu.memref_slice %arg9[%c1_i32_73] : memref<16x!tpu.dma_semaphore, #tpu.memory_space<semaphore_mem>> -> memref<1x!tpu.dma_semaphore, #tpu.memory_space<semaphore_mem>>
      %112 = tpu.memref_squeeze %111 : memref<1x!tpu.dma_semaphore, #tpu.memory_space<semaphore_mem>> -> memref<!tpu.dma_semaphore, #tpu.memory_space<semaphore_mem>>
      tpu.enqueue_dma source(%109 : memref<1x32xf32, #tpu.memory_space<any>>) target(%110 : memref<1x32xf32, #tpu.memory_space<vmem>>) target_semaphore(%112 : memref<!tpu.dma_semaphore, #tpu.memory_space<semaphore_mem>>)
      %c2 = arith.constant 2 : index
      %113 = memref.load %arg1[%c2] : memref<16xi32, #tpu.memory_space<smem>>
      %c2_i32_77 = arith.constant 2 : i32
      %c0_i32_78 = arith.constant 0 : i32
      %114 = tpu.memref_slice %arg2[%113, %c0_i32_78] : memref<50x32xf32, #tpu.memory_space<any>> -> memref<1x32xf32, #tpu.memory_space<any>>
      %c2_i32_79 = arith.constant 2 : i32
      %c0_i32_80 = arith.constant 0 : i32
      %115 = tpu.memref_slice %arg8[%c2_i32_79, %c0_i32_80] : memref<16x32xf32, #tpu.memory_space<vmem>> -> memref<1x32xf32, #tpu.memory_space<vmem>>
      %116 = tpu.memref_slice %arg9[%c2_i32_77] : memref<16x!tpu.dma_semaphore, #tpu.memory_space<semaphore_mem>> -> memref<1x!tpu.dma_semaphore, #tpu.memory_space<semaphore_mem>>
      %117 = tpu.memref_squeeze %116 : memref<1x!tpu.dma_semaphore, #tpu.memory_space<semaphore_mem>> -> memref<!tpu.dma_semaphore, #tpu.memory_space<semaphore_mem>>
      tpu.enqueue_dma source(%114 : memref<1x32xf32, #tpu.memory_space<any>>) target(%115 : memref<1x32xf32, #tpu.memory_space<vmem>>) target_semaphore(%117 : memref<!tpu.dma_semaphore, #tpu.memory_space<semaphore_mem>>)
      %c3 = arith.constant 3 : index
      %118 = memref.load %arg1[%c3] : memref<16xi32, #tpu.memory_space<smem>>
      %c3_i32_81 = arith.constant 3 : i32
      %c0_i32_82 = arith.constant 0 : i32
      %119 = tpu.memref_slice %arg2[%118, %c0_i32_82] : memref<50x32xf32, #tpu.memory_space<any>> -> memref<1x32xf32, #tpu.memory_space<any>>
      %c3_i32_83 = arith.constant 3 : i32
      %c0_i32_84 = arith.constant 0 : i32
      %120 = tpu.memref_slice %arg8[%c3_i32_83, %c0_i32_84] : memref<16x32xf32, #tpu.memory_space<vmem>> -> memref<1x32xf32, #tpu.memory_space<vmem>>
      %121 = tpu.memref_slice %arg9[%c3_i32_81] : memref<16x!tpu.dma_semaphore, #tpu.memory_space<semaphore_mem>> -> memref<1x!tpu.dma_semaphore, #tpu.memory_space<semaphore_mem>>
      %122 = tpu.memref_squeeze %121 : memref<1x!tpu.dma_semaphore, #tpu.memory_space<semaphore_mem>> -> memref<!tpu.dma_semaphore, #tpu.memory_space<semaphore_mem>>
      tpu.enqueue_dma source(%119 : memref<1x32xf32, #tpu.memory_space<any>>) target(%120 : memref<1x32xf32, #tpu.memory_space<vmem>>) target_semaphore(%122 : memref<!tpu.dma_semaphore, #tpu.memory_space<semaphore_mem>>)
      %c4 = arith.constant 4 : index
      %123 = memref.load %arg1[%c4] : memref<16xi32, #tpu.memory_space<smem>>
      %c4_i32_85 = arith.constant 4 : i32
      %c0_i32_86 = arith.constant 0 : i32
      %124 = tpu.memref_slice %arg2[%123, %c0_i32_86] : memref<50x32xf32, #tpu.memory_space<any>> -> memref<1x32xf32, #tpu.memory_space<any>>
      %c4_i32_87 = arith.constant 4 : i32
      %c0_i32_88 = arith.constant 0 : i32
      %125 = tpu.memref_slice %arg8[%c4_i32_87, %c0_i32_88] : memref<16x32xf32, #tpu.memory_space<vmem>> -> memref<1x32xf32, #tpu.memory_space<vmem>>
      %126 = tpu.memref_slice %arg9[%c4_i32_85] : memref<16x!tpu.dma_semaphore, #tpu.memory_space<semaphore_mem>> -> memref<1x!tpu.dma_semaphore, #tpu.memory_space<semaphore_mem>>
      %127 = tpu.memref_squeeze %126 : memref<1x!tpu.dma_semaphore, #tpu.memory_space<semaphore_mem>> -> memref<!tpu.dma_semaphore, #tpu.memory_space<semaphore_mem>>
      tpu.enqueue_dma source(%124 : memref<1x32xf32, #tpu.memory_space<any>>) target(%125 : memref<1x32xf32, #tpu.memory_space<vmem>>) target_semaphore(%127 : memref<!tpu.dma_semaphore, #tpu.memory_space<semaphore_mem>>)
      %c5 = arith.constant 5 : index
      %128 = memref.load %arg1[%c5] : memref<16xi32, #tpu.memory_space<smem>>
      %c5_i32_89 = arith.constant 5 : i32
      %c0_i32_90 = arith.constant 0 : i32
      %129 = tpu.memref_slice %arg2[%128, %c0_i32_90] : memref<50x32xf32, #tpu.memory_space<any>> -> memref<1x32xf32, #tpu.memory_space<any>>
      %c5_i32_91 = arith.constant 5 : i32
      %c0_i32_92 = arith.constant 0 : i32
      %130 = tpu.memref_slice %arg8[%c5_i32_91, %c0_i32_92] : memref<16x32xf32, #tpu.memory_space<vmem>> -> memref<1x32xf32, #tpu.memory_space<vmem>>
      %131 = tpu.memref_slice %arg9[%c5_i32_89] : memref<16x!tpu.dma_semaphore, #tpu.memory_space<semaphore_mem>> -> memref<1x!tpu.dma_semaphore, #tpu.memory_space<semaphore_mem>>
      %132 = tpu.memref_squeeze %131 : memref<1x!tpu.dma_semaphore, #tpu.memory_space<semaphore_mem>> -> memref<!tpu.dma_semaphore, #tpu.memory_space<semaphore_mem>>
      tpu.enqueue_dma source(%129 : memref<1x32xf32, #tpu.memory_space<any>>) target(%130 : memref<1x32xf32, #tpu.memory_space<vmem>>) target_semaphore(%132 : memref<!tpu.dma_semaphore, #tpu.memory_space<semaphore_mem>>)
      %c6 = arith.constant 6 : index
      %133 = memref.load %arg1[%c6] : memref<16xi32, #tpu.memory_space<smem>>
      %c6_i32_93 = arith.constant 6 : i32
      %c0_i32_94 = arith.constant 0 : i32
      %134 = tpu.memref_slice %arg2[%133, %c0_i32_94] : memref<50x32xf32, #tpu.memory_space<any>> -> memref<1x32xf32, #tpu.memory_space<any>>
      %c6_i32_95 = arith.constant 6 : i32
      %c0_i32_96 = arith.constant 0 : i32
      %135 = tpu.memref_slice %arg8[%c6_i32_95, %c0_i32_96] : memref<16x32xf32, #tpu.memory_space<vmem>> -> memref<1x32xf32, #tpu.memory_space<vmem>>
      %136 = tpu.memref_slice %arg9[%c6_i32_93] : memref<16x!tpu.dma_semaphore, #tpu.memory_space<semaphore_mem>> -> memref<1x!tpu.dma_semaphore, #tpu.memory_space<semaphore_mem>>
      %137 = tpu.memref_squeeze %136 : memref<1x!tpu.dma_semaphore, #tpu.memory_space<semaphore_mem>> -> memref<!tpu.dma_semaphore, #tpu.memory_space<semaphore_mem>>
      tpu.enqueue_dma source(%134 : memref<1x32xf32, #tpu.memory_space<any>>) target(%135 : memref<1x32xf32, #tpu.memory_space<vmem>>) target_semaphore(%137 : memref<!tpu.dma_semaphore, #tpu.memory_space<semaphore_mem>>)
      %c7 = arith.constant 7 : index
      %138 = memref.load %arg1[%c7] : memref<16xi32, #tpu.memory_space<smem>>
      %c7_i32_97 = arith.constant 7 : i32
      %c0_i32_98 = arith.constant 0 : i32
      %139 = tpu.memref_slice %arg2[%138, %c0_i32_98] : memref<50x32xf32, #tpu.memory_space<any>> -> memref<1x32xf32, #tpu.memory_space<any>>
      %c7_i32_99 = arith.constant 7 : i32
      %c0_i32_100 = arith.constant 0 : i32
      %140 = tpu.memref_slice %arg8[%c7_i32_99, %c0_i32_100] : memref<16x32xf32, #tpu.memory_space<vmem>> -> memref<1x32xf32, #tpu.memory_space<vmem>>
      %141 = tpu.memref_slice %arg9[%c7_i32_97] : memref<16x!tpu.dma_semaphore, #tpu.memory_space<semaphore_mem>> -> memref<1x!tpu.dma_semaphore, #tpu.memory_space<semaphore_mem>>
      %142 = tpu.memref_squeeze %141 : memref<1x!tpu.dma_semaphore, #tpu.memory_space<semaphore_mem>> -> memref<!tpu.dma_semaphore, #tpu.memory_space<semaphore_mem>>
      tpu.enqueue_dma source(%139 : memref<1x32xf32, #tpu.memory_space<any>>) target(%140 : memref<1x32xf32, #tpu.memory_space<vmem>>) target_semaphore(%142 : memref<!tpu.dma_semaphore, #tpu.memory_space<semaphore_mem>>)
    } else {
    }
    %c1_i32_1 = arith.constant 1 : i32
    %4 = arith.addi %arg0, %c1_i32_1 : i32
    %c2_i32 = arith.constant 2 : i32
    %5 = arith.cmpi slt, %4, %c2_i32 : i32
    %6 = arith.extui %5 : i1 to i32
    %c0_i32_2 = arith.constant 0 : i32
    %7 = arith.cmpi ne, %6, %c0_i32_2 : i32
    scf.if %7 {
      %c1_i32_68 = arith.constant 1 : i32
      %103 = arith.addi %arg0, %c1_i32_68 : i32
      %c1_i32_69 = arith.constant 1 : i32
      %104 = arith.subi %c1_i32_69, %0 : i32
      %c8_i32_70 = arith.constant 8 : i32
      %105 = arith.muli %103, %c8_i32_70 : i32
      %c0_i32_71 = arith.constant 0 : i32
      %106 = arith.addi %105, %c0_i32_71 : i32
      %107 = arith.index_cast %106 : i32 to index
      %108 = memref.load %arg1[%107] : memref<16xi32, #tpu.memory_space<smem>>
      %c8_i32_72 = arith.constant 8 : i32
      %109 = arith.muli %104, %c8_i32_72 : i32
      %c0_i32_73 = arith.constant 0 : i32
      %110 = arith.addi %109, %c0_i32_73 : i32
      %c8_i32_74 = arith.constant 8 : i32
      %111 = arith.muli %104, %c8_i32_74 : i32
      %c0_i32_75 = arith.constant 0 : i32
      %112 = arith.addi %111, %c0_i32_75 : i32
      %c0_i32_76 = arith.constant 0 : i32
      %113 = tpu.memref_slice %arg2[%108, %c0_i32_76] : memref<50x32xf32, #tpu.memory_space<any>> -> memref<1x32xf32, #tpu.memory_space<any>>
      %c0_i32_77 = arith.constant 0 : i32
      %114 = tpu.memref_slice %arg8[%110, %c0_i32_77] : memref<16x32xf32, #tpu.memory_space<vmem>> -> memref<1x32xf32, #tpu.memory_space<vmem>>
      %115 = tpu.memref_slice %arg9[%112] : memref<16x!tpu.dma_semaphore, #tpu.memory_space<semaphore_mem>> -> memref<1x!tpu.dma_semaphore, #tpu.memory_space<semaphore_mem>>
      %116 = tpu.memref_squeeze %115 : memref<1x!tpu.dma_semaphore, #tpu.memory_space<semaphore_mem>> -> memref<!tpu.dma_semaphore, #tpu.memory_space<semaphore_mem>>
      tpu.enqueue_dma source(%113 : memref<1x32xf32, #tpu.memory_space<any>>) target(%114 : memref<1x32xf32, #tpu.memory_space<vmem>>) target_semaphore(%116 : memref<!tpu.dma_semaphore, #tpu.memory_space<semaphore_mem>>)
      %c1_i32_78 = arith.constant 1 : i32
      %117 = arith.addi %105, %c1_i32_78 : i32
      %118 = arith.index_cast %117 : i32 to index
      %119 = memref.load %arg1[%118] : memref<16xi32, #tpu.memory_space<smem>>
      %c8_i32_79 = arith.constant 8 : i32
      %120 = arith.muli %104, %c8_i32_79 : i32
      %c1_i32_80 = arith.constant 1 : i32
      %121 = arith.addi %120, %c1_i32_80 : i32
      %c8_i32_81 = arith.constant 8 : i32
      %122 = arith.muli %104, %c8_i32_81 : i32
      %c1_i32_82 = arith.constant 1 : i32
      %123 = arith.addi %122, %c1_i32_82 : i32
      %c0_i32_83 = arith.constant 0 : i32
      %124 = tpu.memref_slice %arg2[%119, %c0_i32_83] : memref<50x32xf32, #tpu.memory_space<any>> -> memref<1x32xf32, #tpu.memory_space<any>>
      %c0_i32_84 = arith.constant 0 : i32
      %125 = tpu.memref_slice %arg8[%121, %c0_i32_84] : memref<16x32xf32, #tpu.memory_space<vmem>> -> memref<1x32xf32, #tpu.memory_space<vmem>>
      %126 = tpu.memref_slice %arg9[%123] : memref<16x!tpu.dma_semaphore, #tpu.memory_space<semaphore_mem>> -> memref<1x!tpu.dma_semaphore, #tpu.memory_space<semaphore_mem>>
      %127 = tpu.memref_squeeze %126 : memref<1x!tpu.dma_semaphore, #tpu.memory_space<semaphore_mem>> -> memref<!tpu.dma_semaphore, #tpu.memory_space<semaphore_mem>>
      tpu.enqueue_dma source(%124 : memref<1x32xf32, #tpu.memory_space<any>>) target(%125 : memref<1x32xf32, #tpu.memory_space<vmem>>) target_semaphore(%127 : memref<!tpu.dma_semaphore, #tpu.memory_space<semaphore_mem>>)
      %c2_i32_85 = arith.constant 2 : i32
      %128 = arith.addi %105, %c2_i32_85 : i32
      %129 = arith.index_cast %128 : i32 to index
      %130 = memref.load %arg1[%129] : memref<16xi32, #tpu.memory_space<smem>>
      %c8_i32_86 = arith.constant 8 : i32
      %131 = arith.muli %104, %c8_i32_86 : i32
      %c2_i32_87 = arith.constant 2 : i32
      %132 = arith.addi %131, %c2_i32_87 : i32
      %c8_i32_88 = arith.constant 8 : i32
      %133 = arith.muli %104, %c8_i32_88 : i32
      %c2_i32_89 = arith.constant 2 : i32
      %134 = arith.addi %133, %c2_i32_89 : i32
      %c0_i32_90 = arith.constant 0 : i32
      %135 = tpu.memref_slice %arg2[%130, %c0_i32_90] : memref<50x32xf32, #tpu.memory_space<any>> -> memref<1x32xf32, #tpu.memory_space<any>>
      %c0_i32_91 = arith.constant 0 : i32
      %136 = tpu.memref_slice %arg8[%132, %c0_i32_91] : memref<16x32xf32, #tpu.memory_space<vmem>> -> memref<1x32xf32, #tpu.memory_space<vmem>>
      %137 = tpu.memref_slice %arg9[%134] : memref<16x!tpu.dma_semaphore, #tpu.memory_space<semaphore_mem>> -> memref<1x!tpu.dma_semaphore, #tpu.memory_space<semaphore_mem>>
      %138 = tpu.memref_squeeze %137 : memref<1x!tpu.dma_semaphore, #tpu.memory_space<semaphore_mem>> -> memref<!tpu.dma_semaphore, #tpu.memory_space<semaphore_mem>>
      tpu.enqueue_dma source(%135 : memref<1x32xf32, #tpu.memory_space<any>>) target(%136 : memref<1x32xf32, #tpu.memory_space<vmem>>) target_semaphore(%138 : memref<!tpu.dma_semaphore, #tpu.memory_space<semaphore_mem>>)
      %c3_i32_92 = arith.constant 3 : i32
      %139 = arith.addi %105, %c3_i32_92 : i32
      %140 = arith.index_cast %139 : i32 to index
      %141 = memref.load %arg1[%140] : memref<16xi32, #tpu.memory_space<smem>>
      %c8_i32_93 = arith.constant 8 : i32
      %142 = arith.muli %104, %c8_i32_93 : i32
      %c3_i32_94 = arith.constant 3 : i32
      %143 = arith.addi %142, %c3_i32_94 : i32
      %c8_i32_95 = arith.constant 8 : i32
      %144 = arith.muli %104, %c8_i32_95 : i32
      %c3_i32_96 = arith.constant 3 : i32
      %145 = arith.addi %144, %c3_i32_96 : i32
      %c0_i32_97 = arith.constant 0 : i32
      %146 = tpu.memref_slice %arg2[%141, %c0_i32_97] : memref<50x32xf32, #tpu.memory_space<any>> -> memref<1x32xf32, #tpu.memory_space<any>>
      %c0_i32_98 = arith.constant 0 : i32
      %147 = tpu.memref_slice %arg8[%143, %c0_i32_98] : memref<16x32xf32, #tpu.memory_space<vmem>> -> memref<1x32xf32, #tpu.memory_space<vmem>>
      %148 = tpu.memref_slice %arg9[%145] : memref<16x!tpu.dma_semaphore, #tpu.memory_space<semaphore_mem>> -> memref<1x!tpu.dma_semaphore, #tpu.memory_space<semaphore_mem>>
      %149 = tpu.memref_squeeze %148 : memref<1x!tpu.dma_semaphore, #tpu.memory_space<semaphore_mem>> -> memref<!tpu.dma_semaphore, #tpu.memory_space<semaphore_mem>>
      tpu.enqueue_dma source(%146 : memref<1x32xf32, #tpu.memory_space<any>>) target(%147 : memref<1x32xf32, #tpu.memory_space<vmem>>) target_semaphore(%149 : memref<!tpu.dma_semaphore, #tpu.memory_space<semaphore_mem>>)
      %c4_i32_99 = arith.constant 4 : i32
      %150 = arith.addi %105, %c4_i32_99 : i32
      %151 = arith.index_cast %150 : i32 to index
      %152 = memref.load %arg1[%151] : memref<16xi32, #tpu.memory_space<smem>>
      %c8_i32_100 = arith.constant 8 : i32
      %153 = arith.muli %104, %c8_i32_100 : i32
      %c4_i32_101 = arith.constant 4 : i32
      %154 = arith.addi %153, %c4_i32_101 : i32
      %c8_i32_102 = arith.constant 8 : i32
      %155 = arith.muli %104, %c8_i32_102 : i32
      %c4_i32_103 = arith.constant 4 : i32
      %156 = arith.addi %155, %c4_i32_103 : i32
      %c0_i32_104 = arith.constant 0 : i32
      %157 = tpu.memref_slice %arg2[%152, %c0_i32_104] : memref<50x32xf32, #tpu.memory_space<any>> -> memref<1x32xf32, #tpu.memory_space<any>>
      %c0_i32_105 = arith.constant 0 : i32
      %158 = tpu.memref_slice %arg8[%154, %c0_i32_105] : memref<16x32xf32, #tpu.memory_space<vmem>> -> memref<1x32xf32, #tpu.memory_space<vmem>>
      %159 = tpu.memref_slice %arg9[%156] : memref<16x!tpu.dma_semaphore, #tpu.memory_space<semaphore_mem>> -> memref<1x!tpu.dma_semaphore, #tpu.memory_space<semaphore_mem>>
      %160 = tpu.memref_squeeze %159 : memref<1x!tpu.dma_semaphore, #tpu.memory_space<semaphore_mem>> -> memref<!tpu.dma_semaphore, #tpu.memory_space<semaphore_mem>>
      tpu.enqueue_dma source(%157 : memref<1x32xf32, #tpu.memory_space<any>>) target(%158 : memref<1x32xf32, #tpu.memory_space<vmem>>) target_semaphore(%160 : memref<!tpu.dma_semaphore, #tpu.memory_space<semaphore_mem>>)
      %c5_i32_106 = arith.constant 5 : i32
      %161 = arith.addi %105, %c5_i32_106 : i32
      %162 = arith.index_cast %161 : i32 to index
      %163 = memref.load %arg1[%162] : memref<16xi32, #tpu.memory_space<smem>>
      %c8_i32_107 = arith.constant 8 : i32
      %164 = arith.muli %104, %c8_i32_107 : i32
      %c5_i32_108 = arith.constant 5 : i32
      %165 = arith.addi %164, %c5_i32_108 : i32
      %c8_i32_109 = arith.constant 8 : i32
      %166 = arith.muli %104, %c8_i32_109 : i32
      %c5_i32_110 = arith.constant 5 : i32
      %167 = arith.addi %166, %c5_i32_110 : i32
      %c0_i32_111 = arith.constant 0 : i32
      %168 = tpu.memref_slice %arg2[%163, %c0_i32_111] : memref<50x32xf32, #tpu.memory_space<any>> -> memref<1x32xf32, #tpu.memory_space<any>>
      %c0_i32_112 = arith.constant 0 : i32
      %169 = tpu.memref_slice %arg8[%165, %c0_i32_112] : memref<16x32xf32, #tpu.memory_space<vmem>> -> memref<1x32xf32, #tpu.memory_space<vmem>>
      %170 = tpu.memref_slice %arg9[%167] : memref<16x!tpu.dma_semaphore, #tpu.memory_space<semaphore_mem>> -> memref<1x!tpu.dma_semaphore, #tpu.memory_space<semaphore_mem>>
      %171 = tpu.memref_squeeze %170 : memref<1x!tpu.dma_semaphore, #tpu.memory_space<semaphore_mem>> -> memref<!tpu.dma_semaphore, #tpu.memory_space<semaphore_mem>>
      tpu.enqueue_dma source(%168 : memref<1x32xf32, #tpu.memory_space<any>>) target(%169 : memref<1x32xf32, #tpu.memory_space<vmem>>) target_semaphore(%171 : memref<!tpu.dma_semaphore, #tpu.memory_space<semaphore_mem>>)
      %c6_i32_113 = arith.constant 6 : i32
      %172 = arith.addi %105, %c6_i32_113 : i32
      %173 = arith.index_cast %172 : i32 to index
      %174 = memref.load %arg1[%173] : memref<16xi32, #tpu.memory_space<smem>>
      %c8_i32_114 = arith.constant 8 : i32
      %175 = arith.muli %104, %c8_i32_114 : i32
      %c6_i32_115 = arith.constant 6 : i32
      %176 = arith.addi %175, %c6_i32_115 : i32
      %c8_i32_116 = arith.constant 8 : i32
      %177 = arith.muli %104, %c8_i32_116 : i32
      %c6_i32_117 = arith.constant 6 : i32
      %178 = arith.addi %177, %c6_i32_117 : i32
      %c0_i32_118 = arith.constant 0 : i32
      %179 = tpu.memref_slice %arg2[%174, %c0_i32_118] : memref<50x32xf32, #tpu.memory_space<any>> -> memref<1x32xf32, #tpu.memory_space<any>>
      %c0_i32_119 = arith.constant 0 : i32
      %180 = tpu.memref_slice %arg8[%176, %c0_i32_119] : memref<16x32xf32, #tpu.memory_space<vmem>> -> memref<1x32xf32, #tpu.memory_space<vmem>>
      %181 = tpu.memref_slice %arg9[%178] : memref<16x!tpu.dma_semaphore, #tpu.memory_space<semaphore_mem>> -> memref<1x!tpu.dma_semaphore, #tpu.memory_space<semaphore_mem>>
      %182 = tpu.memref_squeeze %181 : memref<1x!tpu.dma_semaphore, #tpu.memory_space<semaphore_mem>> -> memref<!tpu.dma_semaphore, #tpu.memory_space<semaphore_mem>>
      tpu.enqueue_dma source(%179 : memref<1x32xf32, #tpu.memory_space<any>>) target(%180 : memref<1x32xf32, #tpu.memory_space<vmem>>) target_semaphore(%182 : memref<!tpu.dma_semaphore, #tpu.memory_space<semaphore_mem>>)
      %c7_i32_120 = arith.constant 7 : i32
      %183 = arith.addi %105, %c7_i32_120 : i32
      %184 = arith.index_cast %183 : i32 to index
      %185 = memref.load %arg1[%184] : memref<16xi32, #tpu.memory_space<smem>>
      %c8_i32_121 = arith.constant 8 : i32
      %186 = arith.muli %104, %c8_i32_121 : i32
      %c7_i32_122 = arith.constant 7 : i32
      %187 = arith.addi %186, %c7_i32_122 : i32
      %c8_i32_123 = arith.constant 8 : i32
      %188 = arith.muli %104, %c8_i32_123 : i32
      %c7_i32_124 = arith.constant 7 : i32
      %189 = arith.addi %188, %c7_i32_124 : i32
      %c0_i32_125 = arith.constant 0 : i32
      %190 = tpu.memref_slice %arg2[%185, %c0_i32_125] : memref<50x32xf32, #tpu.memory_space<any>> -> memref<1x32xf32, #tpu.memory_space<any>>
      %c0_i32_126 = arith.constant 0 : i32
      %191 = tpu.memref_slice %arg8[%187, %c0_i32_126] : memref<16x32xf32, #tpu.memory_space<vmem>> -> memref<1x32xf32, #tpu.memory_space<vmem>>
      %192 = tpu.memref_slice %arg9[%189] : memref<16x!tpu.dma_semaphore, #tpu.memory_space<semaphore_mem>> -> memref<1x!tpu.dma_semaphore, #tpu.memory_space<semaphore_mem>>
      %193 = tpu.memref_squeeze %192 : memref<1x!tpu.dma_semaphore, #tpu.memory_space<semaphore_mem>> -> memref<!tpu.dma_semaphore, #tpu.memory_space<semaphore_mem>>
      tpu.enqueue_dma source(%190 : memref<1x32xf32, #tpu.memory_space<any>>) target(%191 : memref<1x32xf32, #tpu.memory_space<vmem>>) target_semaphore(%193 : memref<!tpu.dma_semaphore, #tpu.memory_space<semaphore_mem>>)
    } else {
    }
    %c8_i32 = arith.constant 8 : i32
    %8 = arith.muli %0, %c8_i32 : i32
    %c0_i32_3 = arith.constant 0 : i32
    %9 = arith.addi %8, %c0_i32_3 : i32
    %c8_i32_4 = arith.constant 8 : i32
    %10 = arith.muli %0, %c8_i32_4 : i32
    %c0_i32_5 = arith.constant 0 : i32
    %11 = arith.addi %10, %c0_i32_5 : i32
    %c0_i32_6 = arith.constant 0 : i32
    %c0_i32_7 = arith.constant 0 : i32
    %12 = tpu.memref_slice %arg2[%c0_i32_6, %c0_i32_7] : memref<50x32xf32, #tpu.memory_space<any>> -> memref<1x32xf32, #tpu.memory_space<any>>
    %c0_i32_8 = arith.constant 0 : i32
    %13 = tpu.memref_slice %arg8[%9, %c0_i32_8] : memref<16x32xf32, #tpu.memory_space<vmem>> -> memref<1x32xf32, #tpu.memory_space<vmem>>
    %14 = tpu.memref_slice %arg9[%11] : memref<16x!tpu.dma_semaphore, #tpu.memory_space<semaphore_mem>> -> memref<1x!tpu.dma_semaphore, #tpu.memory_space<semaphore_mem>>
    %15 = tpu.memref_squeeze %14 : memref<1x!tpu.dma_semaphore, #tpu.memory_space<semaphore_mem>> -> memref<!tpu.dma_semaphore, #tpu.memory_space<semaphore_mem>>
    tpu.wait_dma2 semaphore(%15 : memref<!tpu.dma_semaphore, #tpu.memory_space<semaphore_mem>>) src(%12 : memref<1x32xf32, #tpu.memory_space<any>>) dst(%13 : memref<1x32xf32, #tpu.memory_space<vmem>>)
    %c8_i32_9 = arith.constant 8 : i32
    %16 = arith.muli %0, %c8_i32_9 : i32
    %c1_i32_10 = arith.constant 1 : i32
    %17 = arith.addi %16, %c1_i32_10 : i32
    %c8_i32_11 = arith.constant 8 : i32
    %18 = arith.muli %0, %c8_i32_11 : i32
    %c1_i32_12 = arith.constant 1 : i32
    %19 = arith.addi %18, %c1_i32_12 : i32
    %c0_i32_13 = arith.constant 0 : i32
    %c0_i32_14 = arith.constant 0 : i32
    %20 = tpu.memref_slice %arg2[%c0_i32_13, %c0_i32_14] : memref<50x32xf32, #tpu.memory_space<any>> -> memref<1x32xf32, #tpu.memory_space<any>>
    %c0_i32_15 = arith.constant 0 : i32
    %21 = tpu.memref_slice %arg8[%17, %c0_i32_15] : memref<16x32xf32, #tpu.memory_space<vmem>> -> memref<1x32xf32, #tpu.memory_space<vmem>>
    %22 = tpu.memref_slice %arg9[%19] : memref<16x!tpu.dma_semaphore, #tpu.memory_space<semaphore_mem>> -> memref<1x!tpu.dma_semaphore, #tpu.memory_space<semaphore_mem>>
    %23 = tpu.memref_squeeze %22 : memref<1x!tpu.dma_semaphore, #tpu.memory_space<semaphore_mem>> -> memref<!tpu.dma_semaphore, #tpu.memory_space<semaphore_mem>>
    tpu.wait_dma2 semaphore(%23 : memref<!tpu.dma_semaphore, #tpu.memory_space<semaphore_mem>>) src(%20 : memref<1x32xf32, #tpu.memory_space<any>>) dst(%21 : memref<1x32xf32, #tpu.memory_space<vmem>>)
    %c8_i32_16 = arith.constant 8 : i32
    %24 = arith.muli %0, %c8_i32_16 : i32
    %c2_i32_17 = arith.constant 2 : i32
    %25 = arith.addi %24, %c2_i32_17 : i32
    %c8_i32_18 = arith.constant 8 : i32
    %26 = arith.muli %0, %c8_i32_18 : i32
    %c2_i32_19 = arith.constant 2 : i32
    %27 = arith.addi %26, %c2_i32_19 : i32
    %c0_i32_20 = arith.constant 0 : i32
    %c0_i32_21 = arith.constant 0 : i32
    %28 = tpu.memref_slice %arg2[%c0_i32_20, %c0_i32_21] : memref<50x32xf32, #tpu.memory_space<any>> -> memref<1x32xf32, #tpu.memory_space<any>>
    %c0_i32_22 = arith.constant 0 : i32
    %29 = tpu.memref_slice %arg8[%25, %c0_i32_22] : memref<16x32xf32, #tpu.memory_space<vmem>> -> memref<1x32xf32, #tpu.memory_space<vmem>>
    %30 = tpu.memref_slice %arg9[%27] : memref<16x!tpu.dma_semaphore, #tpu.memory_space<semaphore_mem>> -> memref<1x!tpu.dma_semaphore, #tpu.memory_space<semaphore_mem>>
    %31 = tpu.memref_squeeze %30 : memref<1x!tpu.dma_semaphore, #tpu.memory_space<semaphore_mem>> -> memref<!tpu.dma_semaphore, #tpu.memory_space<semaphore_mem>>
    tpu.wait_dma2 semaphore(%31 : memref<!tpu.dma_semaphore, #tpu.memory_space<semaphore_mem>>) src(%28 : memref<1x32xf32, #tpu.memory_space<any>>) dst(%29 : memref<1x32xf32, #tpu.memory_space<vmem>>)
    %c8_i32_23 = arith.constant 8 : i32
    %32 = arith.muli %0, %c8_i32_23 : i32
    %c3_i32 = arith.constant 3 : i32
    %33 = arith.addi %32, %c3_i32 : i32
    %c8_i32_24 = arith.constant 8 : i32
    %34 = arith.muli %0, %c8_i32_24 : i32
    %c3_i32_25 = arith.constant 3 : i32
    %35 = arith.addi %34, %c3_i32_25 : i32
    %c0_i32_26 = arith.constant 0 : i32
    %c0_i32_27 = arith.constant 0 : i32
    %36 = tpu.memref_slice %arg2[%c0_i32_26, %c0_i32_27] : memref<50x32xf32, #tpu.memory_space<any>> -> memref<1x32xf32, #tpu.memory_space<any>>
    %c0_i32_28 = arith.constant 0 : i32
    %37 = tpu.memref_slice %arg8[%33, %c0_i32_28] : memref<16x32xf32, #tpu.memory_space<vmem>> -> memref<1x32xf32, #tpu.memory_space<vmem>>
    %38 = tpu.memref_slice %arg9[%35] : memref<16x!tpu.dma_semaphore, #tpu.memory_space<semaphore_mem>> -> memref<1x!tpu.dma_semaphore, #tpu.memory_space<semaphore_mem>>
    %39 = tpu.memref_squeeze %38 : memref<1x!tpu.dma_semaphore, #tpu.memory_space<semaphore_mem>> -> memref<!tpu.dma_semaphore, #tpu.memory_space<semaphore_mem>>
    tpu.wait_dma2 semaphore(%39 : memref<!tpu.dma_semaphore, #tpu.memory_space<semaphore_mem>>) src(%36 : memref<1x32xf32, #tpu.memory_space<any>>) dst(%37 : memref<1x32xf32, #tpu.memory_space<vmem>>)
    %c8_i32_29 = arith.constant 8 : i32
    %40 = arith.muli %0, %c8_i32_29 : i32
    %c4_i32 = arith.constant 4 : i32
    %41 = arith.addi %40, %c4_i32 : i32
    %c8_i32_30 = arith.constant 8 : i32
    %42 = arith.muli %0, %c8_i32_30 : i32
    %c4_i32_31 = arith.constant 4 : i32
    %43 = arith.addi %42, %c4_i32_31 : i32
    %c0_i32_32 = arith.constant 0 : i32
    %c0_i32_33 = arith.constant 0 : i32
    %44 = tpu.memref_slice %arg2[%c0_i32_32, %c0_i32_33] : memref<50x32xf32, #tpu.memory_space<any>> -> memref<1x32xf32, #tpu.memory_space<any>>
    %c0_i32_34 = arith.constant 0 : i32
    %45 = tpu.memref_slice %arg8[%41, %c0_i32_34] : memref<16x32xf32, #tpu.memory_space<vmem>> -> memref<1x32xf32, #tpu.memory_space<vmem>>
    %46 = tpu.memref_slice %arg9[%43] : memref<16x!tpu.dma_semaphore, #tpu.memory_space<semaphore_mem>> -> memref<1x!tpu.dma_semaphore, #tpu.memory_space<semaphore_mem>>
    %47 = tpu.memref_squeeze %46 : memref<1x!tpu.dma_semaphore, #tpu.memory_space<semaphore_mem>> -> memref<!tpu.dma_semaphore, #tpu.memory_space<semaphore_mem>>
    tpu.wait_dma2 semaphore(%47 : memref<!tpu.dma_semaphore, #tpu.memory_space<semaphore_mem>>) src(%44 : memref<1x32xf32, #tpu.memory_space<any>>) dst(%45 : memref<1x32xf32, #tpu.memory_space<vmem>>)
    %c8_i32_35 = arith.constant 8 : i32
    %48 = arith.muli %0, %c8_i32_35 : i32
    %c5_i32 = arith.constant 5 : i32
    %49 = arith.addi %48, %c5_i32 : i32
    %c8_i32_36 = arith.constant 8 : i32
    %50 = arith.muli %0, %c8_i32_36 : i32
    %c5_i32_37 = arith.constant 5 : i32
    %51 = arith.addi %50, %c5_i32_37 : i32
    %c0_i32_38 = arith.constant 0 : i32
    %c0_i32_39 = arith.constant 0 : i32
    %52 = tpu.memref_slice %arg2[%c0_i32_38, %c0_i32_39] : memref<50x32xf32, #tpu.memory_space<any>> -> memref<1x32xf32, #tpu.memory_space<any>>
    %c0_i32_40 = arith.constant 0 : i32
    %53 = tpu.memref_slice %arg8[%49, %c0_i32_40] : memref<16x32xf32, #tpu.memory_space<vmem>> -> memref<1x32xf32, #tpu.memory_space<vmem>>
    %54 = tpu.memref_slice %arg9[%51] : memref<16x!tpu.dma_semaphore, #tpu.memory_space<semaphore_mem>> -> memref<1x!tpu.dma_semaphore, #tpu.memory_space<semaphore_mem>>
    %55 = tpu.memref_squeeze %54 : memref<1x!tpu.dma_semaphore, #tpu.memory_space<semaphore_mem>> -> memref<!tpu.dma_semaphore, #tpu.memory_space<semaphore_mem>>
    tpu.wait_dma2 semaphore(%55 : memref<!tpu.dma_semaphore, #tpu.memory_space<semaphore_mem>>) src(%52 : memref<1x32xf32, #tpu.memory_space<any>>) dst(%53 : memref<1x32xf32, #tpu.memory_space<vmem>>)
    %c8_i32_41 = arith.constant 8 : i32
    %56 = arith.muli %0, %c8_i32_41 : i32
    %c6_i32 = arith.constant 6 : i32
    %57 = arith.addi %56, %c6_i32 : i32
    %c8_i32_42 = arith.constant 8 : i32
    %58 = arith.muli %0, %c8_i32_42 : i32
    %c6_i32_43 = arith.constant 6 : i32
    %59 = arith.addi %58, %c6_i32_43 : i32
    %c0_i32_44 = arith.constant 0 : i32
    %c0_i32_45 = arith.constant 0 : i32
    %60 = tpu.memref_slice %arg2[%c0_i32_44, %c0_i32_45] : memref<50x32xf32, #tpu.memory_space<any>> -> memref<1x32xf32, #tpu.memory_space<any>>
    %c0_i32_46 = arith.constant 0 : i32
    %61 = tpu.memref_slice %arg8[%57, %c0_i32_46] : memref<16x32xf32, #tpu.memory_space<vmem>> -> memref<1x32xf32, #tpu.memory_space<vmem>>
    %62 = tpu.memref_slice %arg9[%59] : memref<16x!tpu.dma_semaphore, #tpu.memory_space<semaphore_mem>> -> memref<1x!tpu.dma_semaphore, #tpu.memory_space<semaphore_mem>>
    %63 = tpu.memref_squeeze %62 : memref<1x!tpu.dma_semaphore, #tpu.memory_space<semaphore_mem>> -> memref<!tpu.dma_semaphore, #tpu.memory_space<semaphore_mem>>
    tpu.wait_dma2 semaphore(%63 : memref<!tpu.dma_semaphore, #tpu.memory_space<semaphore_mem>>) src(%60 : memref<1x32xf32, #tpu.memory_space<any>>) dst(%61 : memref<1x32xf32, #tpu.memory_space<vmem>>)
    %c8_i32_47 = arith.constant 8 : i32
    %64 = arith.muli %0, %c8_i32_47 : i32
    %c7_i32 = arith.constant 7 : i32
    %65 = arith.addi %64, %c7_i32 : i32
    %c8_i32_48 = arith.constant 8 : i32
    %66 = arith.muli %0, %c8_i32_48 : i32
    %c7_i32_49 = arith.constant 7 : i32
    %67 = arith.addi %66, %c7_i32_49 : i32
    %c0_i32_50 = arith.constant 0 : i32
    %c0_i32_51 = arith.constant 0 : i32
    %68 = tpu.memref_slice %arg2[%c0_i32_50, %c0_i32_51] : memref<50x32xf32, #tpu.memory_space<any>> -> memref<1x32xf32, #tpu.memory_space<any>>
    %c0_i32_52 = arith.constant 0 : i32
    %69 = tpu.memref_slice %arg8[%65, %c0_i32_52] : memref<16x32xf32, #tpu.memory_space<vmem>> -> memref<1x32xf32, #tpu.memory_space<vmem>>
    %70 = tpu.memref_slice %arg9[%67] : memref<16x!tpu.dma_semaphore, #tpu.memory_space<semaphore_mem>> -> memref<1x!tpu.dma_semaphore, #tpu.memory_space<semaphore_mem>>
    %71 = tpu.memref_squeeze %70 : memref<1x!tpu.dma_semaphore, #tpu.memory_space<semaphore_mem>> -> memref<!tpu.dma_semaphore, #tpu.memory_space<semaphore_mem>>
    tpu.wait_dma2 semaphore(%71 : memref<!tpu.dma_semaphore, #tpu.memory_space<semaphore_mem>>) src(%68 : memref<1x32xf32, #tpu.memory_space<any>>) dst(%69 : memref<1x32xf32, #tpu.memory_space<vmem>>)
    %c8_i32_53 = arith.constant 8 : i32
    %72 = arith.muli %0, %c8_i32_53 : i32
    %73 = tpu.assume_multiple %72, 8 : i32
    %74 = arith.index_cast %73 : i32 to index
    %c0 = arith.constant 0 : index
    %75 = vector.load %arg8[%74, %c0] : memref<16x32xf32, #tpu.memory_space<vmem>>, vector<8x32xf32>
    %c0_54 = arith.constant 0 : index
    %c0_55 = arith.constant 0 : index
    %76 = vector.load %arg3[%c0_54, %c0_55] : memref<8x32xf32, #tpu.memory_space<vmem>>, vector<8x32xf32>
    %77 = arith.addf %75, %76 : vector<8x32xf32>
    %c0_56 = arith.constant 0 : index
    %c0_57 = arith.constant 0 : index
    %78 = vector.load %arg4[%c0_56, %c0_57] : memref<8x32xf32, #tpu.memory_space<vmem>>, vector<8x32xf32>
    %79 = arith.addf %77, %78 : vector<8x32xf32>
    %cst = arith.constant dense<0.000000e+00> : vector<8xf32>
    %80 = vector.multi_reduction <add>, %79, %cst [1] : vector<8x32xf32> to vector<8xf32>
    %81 = vector.shape_cast %80 : vector<8xf32> to vector<8x1xf32>
    %cst_58 = arith.constant 3.200000e+01 : f32
    %82 = vector.broadcast %cst_58 : f32 to vector<8x1xf32>
    %83 = arith.divf %81, %82 : vector<8x1xf32>
    %84 = vector.broadcast %83 : vector<8x1xf32> to vector<8x32xf32>
    %85 = arith.subf %79, %84 : vector<8x32xf32>
    %86 = arith.mulf %85, %85 : vector<8x32xf32>
    %cst_59 = arith.constant dense<0.000000e+00> : vector<8xf32>
    %87 = vector.multi_reduction <add>, %86, %cst_59 [1] : vector<8x32xf32> to vector<8xf32>
    %88 = vector.shape_cast %87 : vector<8xf32> to vector<8x1xf32>
    %cst_60 = arith.constant 3.200000e+01 : f32
    %89 = vector.broadcast %cst_60 : f32 to vector<8x1xf32>
    %90 = arith.divf %88, %89 : vector<8x1xf32>
    %cst_61 = arith.constant 9.99999996E-13 : f32
    %91 = vector.broadcast %cst_61 : f32 to vector<8x1xf32>
    %92 = arith.addf %90, %91 : vector<8x1xf32>
    %93 = math.rsqrt %92 : vector<8x1xf32>
    %94 = vector.broadcast %93 : vector<8x1xf32> to vector<8x32xf32>
    %95 = arith.mulf %85, %94 : vector<8x32xf32>
    %c0_62 = arith.constant 0 : index
    %c0_63 = arith.constant 0 : index
    %96 = vector.load %arg5[%c0_62, %c0_63] : memref<1x32xf32, #tpu.memory_space<vmem>>, vector<1x32xf32>
    %97 = vector.broadcast %96 : vector<1x32xf32> to vector<8x32xf32>
    %98 = arith.mulf %95, %97 : vector<8x32xf32>
    %c0_64 = arith.constant 0 : index
    %c0_65 = arith.constant 0 : index
    %99 = vector.load %arg6[%c0_64, %c0_65] : memref<1x32xf32, #tpu.memory_space<vmem>>, vector<1x32xf32>
    %100 = vector.broadcast %99 : vector<1x32xf32> to vector<8x32xf32>
    %101 = arith.addf %98, %100 : vector<8x32xf32>
    %c0_66 = arith.constant 0 : index
    %c0_67 = arith.constant 0 : index
    %102 = vector.load %arg7[%c0_66, %c0_67] : memref<8x32xf32, #tpu.memory_space<vmem>>, vector<8x32xf32>
    tpu.vector_store %arg7[%c0_66, %c0_67], %101 {strides = array<i32>} : memref<8x32xf32, #tpu.memory_space<vmem>>, vector<8x32xf32>,
    return
  }
  func.func @transform_1(%arg0: i32, %arg1: memref<16xi32, #tpu.memory_space<smem>>) -> (i32, i32) {
    %c1_i32 = arith.constant 1 : i32
    %c0_i32 = arith.constant 0 : i32
    %0 = arith.cmpi eq, %c1_i32, %c0_i32 : i32
    %c1_i32_0 = arith.constant 1 : i32
    %1 = arith.select %0, %c1_i32_0, %c1_i32 : i32
    %2 = arith.remsi %arg0, %1 : i32
    %c0_i32_1 = arith.constant 0 : i32
    %3 = arith.cmpi ne, %2, %c0_i32_1 : i32
    %c0_i32_2 = arith.constant 0 : i32
    %4 = arith.cmpi slt, %2, %c0_i32_2 : i32
    %c0_i32_3 = arith.constant 0 : i32
    %5 = arith.cmpi slt, %1, %c0_i32_3 : i32
    %6 = arith.xori %4, %5 : i1
    %7 = arith.andi %6, %3 : i1
    %8 = arith.addi %2, %1 : i32
    %9 = arith.select %7, %8, %2 : i32
    %c0_i32_4 = arith.constant 0 : i32
    %c0_i32_5 = arith.constant 0 : i32
    return %9, %c0_i32_4 : i32, i32
  }
  func.func @transform_2(%arg0: i32, %arg1: memref<16xi32, #tpu.memory_space<smem>>) -> (i32, i32) {
    %c0_i32 = arith.constant 0 : i32
    %c0_i32_0 = arith.constant 0 : i32
    return %arg0, %c0_i32 : i32, i32
  }
  func.func @transform_3(%arg0: i32, %arg1: memref<16xi32, #tpu.memory_space<smem>>) -> (i32, i32) {
    %c0_i32 = arith.constant 0 : i32
    %c0_i32_0 = arith.constant 0 : i32
    %c0_i32_1 = arith.constant 0 : i32
    return %c0_i32, %c0_i32_0 : i32, i32
  }
  func.func @transform_4(%arg0: i32, %arg1: memref<16xi32, #tpu.memory_space<smem>>) -> (i32, i32) {
    %c0_i32 = arith.constant 0 : i32
    %c0_i32_0 = arith.constant 0 : i32
    %c0_i32_1 = arith.constant 0 : i32
    return %c0_i32, %c0_i32_0 : i32, i32
  }
  func.func @transform_5(%arg0: i32, %arg1: memref<16xi32, #tpu.memory_space<smem>>) -> (i32, i32) {
    %c0_i32 = arith.constant 0 : i32
    %c0_i32_0 = arith.constant 0 : i32
    return %arg0, %c0_i32 : i32, i32
  }
}

</mosaic_0001>

<llo_original>
// kernel: tpu_custom_call.1
$region0: #{tpu_custom_call.1}
  #allocation0 [shape = 'u32[]', space=smem, size = 0x4, offset = 0x4, fixed_abs, tag = 'smem constant byte address 0x4 - core index']
  #allocation1 [shape = 'u32[72,128]{1,0:T(1,128)}', space=vmem, size = 0x9000, scoped, tag = 'internal scratch']
  #allocation2 [shape = 'f32[16,32]{1,0:T(8,128)}', space=vmem, size = 0x2000, scoped, tag = 'scratch operand']
  #allocation3 [shape = 's32[16]{0}', space=sflag, size = 0x40, scoped, tag = 'scratch operand']
  #allocation4 [shape = 's32[1]{0}', space=sflag, size = 0x4, scoped, tag = 'scoped memory for tpu_custom_call.1']
  #allocation5 [shape = 'u8[512]{0}', space=smem, size = 0x200, scoped, tag = 'prefetched SMEM operand 0']
  #allocation8 [shape = 's32[]', space=sflag, size = 0x4, offset = 0, fixed_abs, tag = 'sflag constant byte address 0x0 - dummy sync flag']
  #allocation9 [shape = 's32[]', space=sflag, size = 0x4, offset = 0, fixed_abs, tag = 'sflag constant byte address 0x0 - dummy sync flag']
  #allocation10 [shape = 's32[]', space=sflag, size = 0x4, offset = 0, fixed_abs, tag = 'sflag constant byte address 0x0 - dummy sync flag']
  #allocation11 [shape = 's32[]', space=sflag, size = 0x4, offset = 0, fixed_abs, tag = 'sflag constant byte address 0x0 - dummy sync flag']
  #allocation12 [shape = 's32[]', space=sflag, size = 0x4, offset = 0, fixed_abs, tag = 'sflag constant byte address 0x0 - dummy sync flag']
  #allocation13 [shape = 's32[]', space=sflag, size = 0x4, offset = 0, fixed_abs, tag = 'sflag constant byte address 0x0 - dummy sync flag']
  #allocation14 [shape = 's32[]', space=sflag, size = 0x4, offset = 0, fixed_abs, tag = 'sflag constant byte address 0x0 - dummy sync flag']
  #allocation15 [shape = 's32[]', space=sflag, size = 0x4, offset = 0, fixed_abs, tag = 'sflag constant byte address 0x0 - dummy sync flag']
  #allocation16 [shape = 's32[]', space=sflag, size = 0x4, offset = 0, fixed_abs, tag = 'sflag constant byte address 0x0 - dummy sync flag']
  #allocation17 [shape = 's32[]', space=sflag, size = 0x4, offset = 0, fixed_abs, tag = 'sflag constant byte address 0x0 - dummy sync flag']
  #allocation18 [shape = 's32[]', space=sflag, size = 0x4, offset = 0, fixed_abs, tag = 'sflag constant byte address 0x0 - dummy sync flag']
  #allocation19 [shape = 's32[]', space=sflag, size = 0x4, offset = 0, fixed_abs, tag = 'sflag constant byte address 0x0 - dummy sync flag']
  #allocation20 [shape = 's32[]', space=sflag, size = 0x4, offset = 0, fixed_abs, tag = 'sflag constant byte address 0x0 - dummy sync flag']
  #allocation21 [shape = 's32[]', space=sflag, size = 0x4, offset = 0, fixed_abs, tag = 'sflag constant byte address 0x0 - dummy sync flag']
  #allocation22 [shape = 's32[]', space=sflag, size = 0x4, offset = 0, fixed_abs, tag = 'sflag constant byte address 0x0 - dummy sync flag']
  #allocation23 [shape = 's32[]', space=sflag, size = 0x4, offset = 0, fixed_abs, tag = 'sflag constant byte address 0x0 - dummy sync flag']
  %s0 = inlined_call_operand.vmem [shape: s32[16], index: 0, kind: input, shape index: {}]
  %s1 = inlined_call_operand.vmem [shape: f32[50,32], index: 1, kind: input, shape index: {}]
  %s2 = inlined_call_operand.vmem [shape: f32[512,32], index: 2, kind: input, shape index: {}]
  %s3 = inlined_call_operand.vmem [shape: f32[16,32], index: 3, kind: input, shape index: {}]
  %s4 = inlined_call_operand.vmem [shape: f32[1,32], index: 4, kind: input, shape index: {}]
  %s5 = inlined_call_operand.vmem [shape: f32[1,32], index: 5, kind: input, shape index: {}]
  %s6 = inlined_call_operand.hbm [shape: f32[16,32], index: 6, kind: output, shape index: {}]
  %s7 = sld [smem:[#allocation0]]
  $region537: #{tpu_custom_call.1} parent=0
    _
  %s9 = ssub.s32 1, %s7
  %s10 = scalar_select 0, %s9, %s7
  %s12 = sshll.u32 %s0, 4
  %s13 = int_to_ptr.vmem [resolvable:$true] %s12
  %15 = dma.vmem_to_smem %s13, 16, [#allocation5], [#allocation4]
  %17 = dma.done [#allocation4], 16
  %18 = sfence
  $region1: #{tpu_custom_call.1} parent=0
    #allocation6 [shape = 'u8[8192]{0}', space=vmem, size = 0x2000, scoped, tag = 'output window, operand 0']
    #allocation7 [shape = 's32[2]{0}', space=sflag, size = 0x8, scoped, tag = 'scoped memory for tpu_custom_call.1']
    %19 = vsyncpa [#allocation7], 0
    %s20 = scalar_lea.sflag [#allocation7], 1
    %21 = vsyncpa %s20, 0
    loop: start=0, step=1, limit=4
    $region2: #{tpu_custom_call.1} parent=1 // loop_pre_header
      _
    $region3: #{tpu_custom_call.1} parent=1 // loop_header
      %s23 = sphi 0, %s27
      %p24 = scmp.ge.s32.totalorder %s23, 4
      %s31 = sphi 0, %s31
      %s33 = sphi 0, %s31
      %s34 = sphi 0, %s33
      %s48 = sphi 0, %s34
      %s54 = sphi 0, %s56
      %s57 = sphi 0, %s54
      %s58 = sphi 0, %s57
      %s74 = sphi 0, %s58
      %s78 = sphi 0, %s78
      %s80 = sphi 0, %s78
      %s81 = sphi 0, %s80
      %s95 = sphi 0, %s81
      %s99 = sphi 0, %s99
      %s101 = sphi 0, %s99
      %s102 = sphi 0, %s101
      %s116 = sphi 0, %s102
      %s122 = sphi 0, %s124
      %s125 = sphi 0, %s122
      %s126 = sphi 0, %s125
      %s142 = sphi 0, %s126
    $region4: #{tpu_custom_call.1} parent=1 // loop_header_branch
      %26 = sbr.rel (%p24) target = $region8
    $region5: #{tpu_custom_call.1} parent=1 // loop_body
      %s28 = ssub.s32 %s23, 1
      %s29 = ssub.s32 %s23, 2
      %s30 = sadd.s32 %s23, 1
      %s32 = sadd.s32 %s31, 1
      %p35 = scmp.eq.s32.totalorder %s23, 1
      %p36 = scmp.ne.s32.totalorder %s31, %s33
      %p37 = scmp.eq.s32.totalorder %s23, 0
      %p38 = por %p36, %p37
      %p39 = scmp.ne.s32.totalorder %s31, %s33
      %p40 = scmp.eq.s32.totalorder %s28, 1
      %p41 = por %p39, %p40
      %p42 = scmp.ne.s32.totalorder %s33, %s34
      %p43 = scmp.eq.s32.totalorder %s28, 0
      %p44 = por %p42, %p43
      %p45 = scmp.ne.s32.totalorder %s33, %s34
      %p46 = scmp.eq.s32.totalorder %s29, 1
      %p47 = por %p45, %p46
      %p49 = scmp.ne.s32.totalorder %s34, %s48
      %p50 = scmp.eq.s32.totalorder %s29, 0
      %p51 = por %p49, %p50
      %s52 = ssub.s32 %s23, %s30
      %p53 = scmp.eq.s32.totalorder %s52, 0
      %s55 = sadd.s32 %s54, 1
      %s56 = scalar_select %p53, %s54, %s55
      %p59 = pneg %p53
      %p60 = scmp.eq.s32.totalorder %s23, 1
      %p61 = por %p59, %p60
      %p62 = scmp.ne.s32.totalorder %s54, %s57
      %p63 = scmp.eq.s32.totalorder %s23, 0
      %p64 = por %p62, %p63
      %p65 = scmp.ne.s32.totalorder %s54, %s57
      %p66 = scmp.eq.s32.totalorder %s28, 1
      %p67 = por %p65, %p66
      %p68 = scmp.ne.s32.totalorder %s57, %s58
      %p69 = scmp.eq.s32.totalorder %s28, 0
      %p70 = por %p68, %p69
      %p71 = scmp.ne.s32.totalorder %s57, %s58
      %p72 = scmp.eq.s32.totalorder %s29, 1
      %p73 = por %p71, %p72
      %p75 = scmp.ne.s32.totalorder %s58, %s74
      %p76 = scmp.eq.s32.totalorder %s29, 0
      %p77 = por %p75, %p76
      %s79 = sadd.s32 %s78, 1
      %p82 = scmp.eq.s32.totalorder %s23, 1
      %p83 = scmp.ne.s32.totalorder %s78, %s80
      %p84 = scmp.eq.s32.totalorder %s23, 0
      %p85 = por %p83, %p84
      %p86 = scmp.ne.s32.totalorder %s78, %s80
      %p87 = scmp.eq.s32.totalorder %s28, 1
      %p88 = por %p86, %p87
      %p89 = scmp.ne.s32.totalorder %s80, %s81
      %p90 = scmp.eq.s32.totalorder %s28, 0
      %p91 = por %p89, %p90
      %p92 = scmp.ne.s32.totalorder %s80, %s81
      %p93 = scmp.eq.s32.totalorder %s29, 1
      %p94 = por %p92, %p93
      %p96 = scmp.ne.s32.totalorder %s81, %s95
      %p97 = scmp.eq.s32.totalorder %s29, 0
      %p98 = por %p96, %p97
      %s100 = sadd.s32 %s99, 1
      %p103 = scmp.eq.s32.totalorder %s23, 1
      %p104 = scmp.ne.s32.totalorder %s99, %s101
      %p105 = scmp.eq.s32.totalorder %s23, 0
      %p106 = por %p104, %p105
      %p107 = scmp.ne.s32.totalorder %s99, %s101
      %p108 = scmp.eq.s32.totalorder %s28, 1
      %p109 = por %p107, %p108
      %p110 = scmp.ne.s32.totalorder %s101, %s102
      %p111 = scmp.eq.s32.totalorder %s28, 0
      %p112 = por %p110, %p111
      %p113 = scmp.ne.s32.totalorder %s101, %s102
      %p114 = scmp.eq.s32.totalorder %s29, 1
      %p115 = por %p113, %p114
      %p117 = scmp.ne.s32.totalorder %s102, %s116
      %p118 = scmp.eq.s32.totalorder %s29, 0
      %p119 = por %p117, %p118
      %s120 = ssub.s32 %s23, %s30
      %p121 = scmp.eq.s32.totalorder %s120, 0
      %s123 = sadd.s32 %s122, 1
      %s124 = scalar_select %p121, %s122, %s123
      %p127 = pneg %p121
      %p128 = scmp.eq.s32.totalorder %s23, 1
      %p129 = por %p127, %p128
      %p130 = scmp.ne.s32.totalorder %s122, %s125
      %p131 = scmp.eq.s32.totalorder %s23, 0
      %p132 = por %p130, %p131
      %p133 = scmp.ne.s32.totalorder %s122, %s125
      %p134 = scmp.eq.s32.totalorder %s28, 1
      %p135 = por %p133, %p134
      %p136 = scmp.ne.s32.totalorder %s125, %s126
      %p137 = scmp.eq.s32.totalorder %s28, 0
      %p138 = por %p136, %p137
      %p139 = scmp.ne.s32.totalorder %s125, %s126
      %p140 = scmp.eq.s32.totalorder %s29, 1
      %p141 = por %p139, %p140
      %p143 = scmp.ne.s32.totalorder %s126, %s142
      %p144 = scmp.eq.s32.totalorder %s29, 0
      %p145 = por %p143, %p144
      %p146 = scmp.le.s32.totalorder 1, %s23
      %p147 = scmp.lt.s32.totalorder %s23, 3
      %p148 = pnand %p146, %p147
      %p149 = pneg %p148
      // Predicated region
      $region9: #{tpu_custom_call.1} parent=5 // pred_check
        _
      $region10: #{tpu_custom_call.1} parent=5 // pred_check_branch
        %151 = sbr.rel (%p148) target = $region12
      $region11: #{tpu_custom_call.1} parent=5 // pred_region
        %s152 = ssub.s32 %s23, 1
        // Predicated region
        $region13: #{tpu_custom_call.1} parent=11 // pred_check
          %p153 = pneg %p44
        $region14: #{tpu_custom_call.1} parent=11 // pred_check_branch
          %155 = sbr.rel (%p153) target = $region16
        $region15: #{tpu_custom_call.1} parent=11 // pred_region
          _
        $region16: #{tpu_custom_call.1} parent=11 // pred_fallthru
          _
        // Predicated region
        $region17: #{tpu_custom_call.1} parent=11 // pred_check
          %p156 = pneg %p91
        $region18: #{tpu_custom_call.1} parent=11 // pred_check_branch
          %158 = sbr.rel (%p156) target = $region20
        $region19: #{tpu_custom_call.1} parent=11 // pred_region
          _
        $region20: #{tpu_custom_call.1} parent=11 // pred_fallthru
          _
        // Predicated region
        $region21: #{tpu_custom_call.1} parent=11 // pred_check
          %p159 = pneg %p112
        $region22: #{tpu_custom_call.1} parent=11 // pred_check_branch
          %161 = sbr.rel (%p159) target = $region24
        $region23: #{tpu_custom_call.1} parent=11 // pred_region
          _
        $region24: #{tpu_custom_call.1} parent=11 // pred_fallthru
          _
      $region12: #{tpu_custom_call.1} parent=5 // pred_fallthru
        _
      %p162 = scmp.lt.s32.totalorder %s23, 2
      // Predicated region
      $region25: #{tpu_custom_call.1} parent=5 // pred_check
        %p163 = pneg %p162
      $region26: #{tpu_custom_call.1} parent=5 // pred_check_branch
        %165 = sbr.rel (%p163) target = $region28
      $region27: #{tpu_custom_call.1} parent=5 // pred_region
        // Predicated region
        $region29: #{tpu_custom_call.1} parent=27 // pred_check
          %p166 = pneg %p64
        $region30: #{tpu_custom_call.1} parent=27 // pred_check_branch
          %168 = sbr.rel (%p166) target = $region32
        $region31: #{tpu_custom_call.1} parent=27 // pred_region
          %p169 = scmp.lt.s32.totalorder %s23, 1
          %s170 = scalar_select %p169, %s23, 1
          %s171 = smul.addr %s170, 8
          %s172 = scalar_lea.vmem %s3, %s171
        $region32: #{tpu_custom_call.1} parent=27 // pred_fallthru
          _
      $region28: #{tpu_custom_call.1} parent=5 // pred_fallthru
        _
      %p173 = scmp.le.s32.totalorder 1, %s23
      %p174 = scmp.lt.s32.totalorder %s23, 3
      %p175 = pnand %p173, %p174
      %p176 = pneg %p175
      // Predicated region
      $region33: #{tpu_custom_call.1} parent=5 // pred_check
        _
      $region34: #{tpu_custom_call.1} parent=5 // pred_check_branch
        %178 = sbr.rel (%p175) target = $region36
      $region35: #{tpu_custom_call.1} parent=5 // pred_region
        %s179 = ssub.s32 %s23, 1
        %p180 = pneg %p44
        %p181 = pneg %p41
        %p182 = scmp.lt.s32.totalorder %s28, 1
        %s183 = scalar_select %p182, %s28, 1
        %s184 = smul.addr %s183, 8
        %s185 = scalar_lea.vmem %s3, %s184
        %p186 = pneg %p70
        %p187 = pneg %p67
        %p188 = pneg %p91
        %p189 = pneg %p88
        %p190 = pneg %p112
        %p191 = pneg %p109
        %p192 = pneg %p138
        %p193 = pneg %p135
        %s194 = sand.u32 %s125, 1
        %s195 = scalar_lea.sflag [#allocation7], %s194
        %s196 = sand.u32 %s125, 1
        %s197 = smul.addr %s196, 8
        %s198 = scalar_lea.vmem [#allocation6], %s197
        %p199 = scmp.lt.s32.totalorder %s28, 1
        %s200 = scalar_select %p199, %s28, 1
        %s201 = smul.addr %s200, 8
        %s202 = scalar_lea.vmem %s3, %s201
        %s203 = sand.u32 %s28, 1
        %p204 = scmp.eq.s32.totalorder %s28, 0
        // Predicated region
        $region37: #{tpu_custom_call.1} parent=35 // pred_check
          %p205 = pneg %p204
        $region38: #{tpu_custom_call.1} parent=35 // pred_check_branch
          %207 = sbr.rel (%p205) target = $region40
        $region39: #{tpu_custom_call.1} parent=35 // pred_region
          %s208 = sld [smem:[#allocation5]]
          %s209 = scalar_lea.vmem %s1, %s208
          // Predicated region
          $region41: #{tpu_custom_call.1} parent=39 // pred_check
            _
          $region42: #{tpu_custom_call.1} parent=39 // pred_check_branch
            %211 = sbr.rel target = $region44
          $region43: #{tpu_custom_call.1} parent=39 // pred_region
            // Predicated region
            $region56: #{tpu_custom_call.1} parent=43 // pred_check
              _
            $region57: #{tpu_custom_call.1} parent=43 // pred_check_branch
              %227 = sbr.rel (0) target = $region59
            $region58: #{tpu_custom_call.1} parent=43 // pred_region
              %s229 = ssub.s32 2, 1
              loop: start=0, step=1, limit=1
              $region60: #{tpu_custom_call.1} parent=58 // loop_pre_header
                _
              $region61: #{tpu_custom_call.1} parent=58 // loop_header
                %s231 = sphi 0, %s235
                %p232 = scmp.ge.s32.totalorder %s231, 1
                %s236 = sphi %s209, %s209
                %s237 = sphi [#allocation2], [#allocation2]
              $region62: #{tpu_custom_call.1} parent=58 // loop_header_branch
                %234 = sbr.rel (%p232) target = $region66
              $region63: #{tpu_custom_call.1} parent=58 // loop_body
                %v238 = vld [vmem:[%s236] sm:%s229]
                %239 = vst [vmem:[%s237] sm:%s229] %v238
              $region64: #{tpu_custom_call.1} parent=58 // loop_footer
                %s235 = sadd.s32 1, %s231
              $region65: #{tpu_custom_call.1} parent=58 // loop_footer_branch
                %230 = sbr.rel target = $region61
              $region66: #{tpu_custom_call.1} parent=58 // loop_exit
                _
            $region59: #{tpu_custom_call.1} parent=43 // pred_fallthru
              _
          $region44: #{tpu_custom_call.1} parent=39 // pred_fallthru
            _
          // Predicated region
          $region45: #{tpu_custom_call.1} parent=39 // pred_check
            _
          $region46: #{tpu_custom_call.1} parent=39 // pred_check_branch
            %213 = sbr.rel (0) target = $region48
          $region47: #{tpu_custom_call.1} parent=39 // pred_region
            %s215 = ssub.s32 2, 1
            loop: start=0, step=1, limit=1
            $region49: #{tpu_custom_call.1} parent=47 // loop_pre_header
              _
            $region50: #{tpu_custom_call.1} parent=47 // loop_header
              %s217 = sphi 0, %s221
              %p218 = scmp.ge.s32.totalorder %s217, 1
              %s222 = sphi %s209, %s209
              %s223 = sphi [#allocation2], [#allocation2]
            $region51: #{tpu_custom_call.1} parent=47 // loop_header_branch
              %220 = sbr.rel (%p218) target = $region55
            $region52: #{tpu_custom_call.1} parent=47 // loop_body
              %v224 = vld [vmem:[%s222] sm:%s215]
              %225 = vst [vmem:[%s223] sm:%s215] %v224
            $region53: #{tpu_custom_call.1} parent=47 // loop_footer
              %s221 = sadd.s32 1, %s217
            $region54: #{tpu_custom_call.1} parent=47 // loop_footer_branch
              %216 = sbr.rel target = $region50
            $region55: #{tpu_custom_call.1} parent=47 // loop_exit
              _
          $region48: #{tpu_custom_call.1} parent=39 // pred_fallthru
            _
          // Predicated region
          $region67: #{tpu_custom_call.1} parent=39 // pred_check
            _
          $region68: #{tpu_custom_call.1} parent=39 // pred_check_branch
            %242 = sbr.rel (0) target = $region70
          $region69: #{tpu_custom_call.1} parent=39 // pred_region
            %243 = vsyncadd [#allocation3], 16
          $region70: #{tpu_custom_call.1} parent=39 // pred_fallthru
            _
          %s244 = sld [smem:[#allocation5 + $0x1]]
          %s245 = scalar_lea.vmem %s1, %s244
          %s246 = scalar_lea.vmem [#allocation2], 1
          %s247 = scalar_lea.sflag [#allocation3], 1
          // Predicated region
          $region71: #{tpu_custom_call.1} parent=39 // pred_check
            _
          $region72: #{tpu_custom_call.1} parent=39 // pred_check_branch
            %249 = sbr.rel target = $region74
          $region73: #{tpu_custom_call.1} parent=39 // pred_region
            // Predicated region
            $region86: #{tpu_custom_call.1} parent=73 // pred_check
              _
            $region87: #{tpu_custom_call.1} parent=73 // pred_check_branch
              %265 = sbr.rel (0) target = $region89
            $region88: #{tpu_custom_call.1} parent=73 // pred_region
              %s267 = ssub.s32 2, 1
              loop: start=0, step=1, limit=1
              $region90: #{tpu_custom_call.1} parent=88 // loop_pre_header
                _
              $region91: #{tpu_custom_call.1} parent=88 // loop_header
                %s269 = sphi 0, %s273
                %p270 = scmp.ge.s32.totalorder %s269, 1
                %s274 = sphi %s245, %s245
                %s275 = sphi %s246, %s246
              $region92: #{tpu_custom_call.1} parent=88 // loop_header_branch
                %272 = sbr.rel (%p270) target = $region96
              $region93: #{tpu_custom_call.1} parent=88 // loop_body
                %v276 = vld [vmem:[%s274] sm:%s267]
                %277 = vst [vmem:[%s275] sm:%s267] %v276
              $region94: #{tpu_custom_call.1} parent=88 // loop_footer
                %s273 = sadd.s32 1, %s269
              $region95: #{tpu_custom_call.1} parent=88 // loop_footer_branch
                %268 = sbr.rel target = $region91
              $region96: #{tpu_custom_call.1} parent=88 // loop_exit
                _
            $region89: #{tpu_custom_call.1} parent=73 // pred_fallthru
              _
          $region74: #{tpu_custom_call.1} parent=39 // pred_fallthru
            _
          // Predicated region
          $region75: #{tpu_custom_call.1} parent=39 // pred_check
            _
          $region76: #{tpu_custom_call.1} parent=39 // pred_check_branch
            %251 = sbr.rel (0) target = $region78
          $region77: #{tpu_custom_call.1} parent=39 // pred_region
            %s253 = ssub.s32 2, 1
            loop: start=0, step=1, limit=1
            $region79: #{tpu_custom_call.1} parent=77 // loop_pre_header
              _
            $region80: #{tpu_custom_call.1} parent=77 // loop_header
              %s255 = sphi 0, %s259
              %p256 = scmp.ge.s32.totalorder %s255, 1
              %s260 = sphi %s245, %s245
              %s261 = sphi %s246, %s246
            $region81: #{tpu_custom_call.1} parent=77 // loop_header_branch
              %258 = sbr.rel (%p256) target = $region85
            $region82: #{tpu_custom_call.1} parent=77 // loop_body
              %v262 = vld [vmem:[%s260] sm:%s253]
              %263 = vst [vmem:[%s261] sm:%s253] %v262
            $region83: #{tpu_custom_call.1} parent=77 // loop_footer
              %s259 = sadd.s32 1, %s255
            $region84: #{tpu_custom_call.1} parent=77 // loop_footer_branch
              %254 = sbr.rel target = $region80
            $region85: #{tpu_custom_call.1} parent=77 // loop_exit
              _
          $region78: #{tpu_custom_call.1} parent=39 // pred_fallthru
            _
          // Predicated region
          $region97: #{tpu_custom_call.1} parent=39 // pred_check
            _
          $region98: #{tpu_custom_call.1} parent=39 // pred_check_branch
            %280 = sbr.rel (0) target = $region100
          $region99: #{tpu_custom_call.1} parent=39 // pred_region
            %281 = vsyncadd %s247, 16
          $region100: #{tpu_custom_call.1} parent=39 // pred_fallthru
            _
          %s282 = sld [smem:[#allocation5 + $0x2]]
          %s283 = scalar_lea.vmem %s1, %s282
          %s284 = scalar_lea.vmem [#allocation2], 2
          %s285 = scalar_lea.sflag [#allocation3], 2
          // Predicated region
          $region101: #{tpu_custom_call.1} parent=39 // pred_check
            _
          $region102: #{tpu_custom_call.1} parent=39 // pred_check_branch
            %287 = sbr.rel target = $region104
          $region103: #{tpu_custom_call.1} parent=39 // pred_region
            // Predicated region
            $region116: #{tpu_custom_call.1} parent=103 // pred_check
              _
            $region117: #{tpu_custom_call.1} parent=103 // pred_check_branch
              %303 = sbr.rel (0) target = $region119
            $region118: #{tpu_custom_call.1} parent=103 // pred_region
              %s305 = ssub.s32 2, 1
              loop: start=0, step=1, limit=1
              $region120: #{tpu_custom_call.1} parent=118 // loop_pre_header
                _
              $region121: #{tpu_custom_call.1} parent=118 // loop_header
                %s307 = sphi 0, %s311
                %p308 = scmp.ge.s32.totalorder %s307, 1
                %s312 = sphi %s283, %s283
                %s313 = sphi %s284, %s284
              $region122: #{tpu_custom_call.1} parent=118 // loop_header_branch
                %310 = sbr.rel (%p308) target = $region126
              $region123: #{tpu_custom_call.1} parent=118 // loop_body
                %v314 = vld [vmem:[%s312] sm:%s305]
                %315 = vst [vmem:[%s313] sm:%s305] %v314
              $region124: #{tpu_custom_call.1} parent=118 // loop_footer
                %s311 = sadd.s32 1, %s307
              $region125: #{tpu_custom_call.1} parent=118 // loop_footer_branch
                %306 = sbr.rel target = $region121
              $region126: #{tpu_custom_call.1} parent=118 // loop_exit
                _
            $region119: #{tpu_custom_call.1} parent=103 // pred_fallthru
              _
          $region104: #{tpu_custom_call.1} parent=39 // pred_fallthru
            _
          // Predicated region
          $region105: #{tpu_custom_call.1} parent=39 // pred_check
            _
          $region106: #{tpu_custom_call.1} parent=39 // pred_check_branch
            %289 = sbr.rel (0) target = $region108
          $region107: #{tpu_custom_call.1} parent=39 // pred_region
            %s291 = ssub.s32 2, 1
            loop: start=0, step=1, limit=1
            $region109: #{tpu_custom_call.1} parent=107 // loop_pre_header
              _
            $region110: #{tpu_custom_call.1} parent=107 // loop_header
              %s293 = sphi 0, %s297
              %p294 = scmp.ge.s32.totalorder %s293, 1
              %s298 = sphi %s283, %s283
              %s299 = sphi %s284, %s284
            $region111: #{tpu_custom_call.1} parent=107 // loop_header_branch
              %296 = sbr.rel (%p294) target = $region115
            $region112: #{tpu_custom_call.1} parent=107 // loop_body
              %v300 = vld [vmem:[%s298] sm:%s291]
              %301 = vst [vmem:[%s299] sm:%s291] %v300
            $region113: #{tpu_custom_call.1} parent=107 // loop_footer
              %s297 = sadd.s32 1, %s293
            $region114: #{tpu_custom_call.1} parent=107 // loop_footer_branch
              %292 = sbr.rel target = $region110
            $region115: #{tpu_custom_call.1} parent=107 // loop_exit
              _
          $region108: #{tpu_custom_call.1} parent=39 // pred_fallthru
            _
          // Predicated region
          $region127: #{tpu_custom_call.1} parent=39 // pred_check
            _
          $region128: #{tpu_custom_call.1} parent=39 // pred_check_branch
            %318 = sbr.rel (0) target = $region130
          $region129: #{tpu_custom_call.1} parent=39 // pred_region
            %319 = vsyncadd %s285, 16
          $region130: #{tpu_custom_call.1} parent=39 // pred_fallthru
            _
          %s320 = sld [smem:[#allocation5 + $0x3]]
          %s321 = scalar_lea.vmem %s1, %s320
          %s322 = scalar_lea.vmem [#allocation2], 3
          %s323 = scalar_lea.sflag [#allocation3], 3
          // Predicated region
          $region131: #{tpu_custom_call.1} parent=39 // pred_check
            _
          $region132: #{tpu_custom_call.1} parent=39 // pred_check_branch
            %325 = sbr.rel target = $region134
          $region133: #{tpu_custom_call.1} parent=39 // pred_region
            // Predicated region
            $region146: #{tpu_custom_call.1} parent=133 // pred_check
              _
            $region147: #{tpu_custom_call.1} parent=133 // pred_check_branch
              %341 = sbr.rel (0) target = $region149
            $region148: #{tpu_custom_call.1} parent=133 // pred_region
              %s343 = ssub.s32 2, 1
              loop: start=0, step=1, limit=1
              $region150: #{tpu_custom_call.1} parent=148 // loop_pre_header
                _
              $region151: #{tpu_custom_call.1} parent=148 // loop_header
                %s345 = sphi 0, %s349
                %p346 = scmp.ge.s32.totalorder %s345, 1
                %s350 = sphi %s321, %s321
                %s351 = sphi %s322, %s322
              $region152: #{tpu_custom_call.1} parent=148 // loop_header_branch
                %348 = sbr.rel (%p346) target = $region156
              $region153: #{tpu_custom_call.1} parent=148 // loop_body
                %v352 = vld [vmem:[%s350] sm:%s343]
                %353 = vst [vmem:[%s351] sm:%s343] %v352
              $region154: #{tpu_custom_call.1} parent=148 // loop_footer
                %s349 = sadd.s32 1, %s345
              $region155: #{tpu_custom_call.1} parent=148 // loop_footer_branch
                %344 = sbr.rel target = $region151
              $region156: #{tpu_custom_call.1} parent=148 // loop_exit
                _
            $region149: #{tpu_custom_call.1} parent=133 // pred_fallthru
              _
          $region134: #{tpu_custom_call.1} parent=39 // pred_fallthru
            _
          // Predicated region
          $region135: #{tpu_custom_call.1} parent=39 // pred_check
            _
          $region136: #{tpu_custom_call.1} parent=39 // pred_check_branch
            %327 = sbr.rel (0) target = $region138
          $region137: #{tpu_custom_call.1} parent=39 // pred_region
            %s329 = ssub.s32 2, 1
            loop: start=0, step=1, limit=1
            $region139: #{tpu_custom_call.1} parent=137 // loop_pre_header
              _
            $region140: #{tpu_custom_call.1} parent=137 // loop_header
              %s331 = sphi 0, %s335
              %p332 = scmp.ge.s32.totalorder %s331, 1
              %s336 = sphi %s321, %s321
              %s337 = sphi %s322, %s322
            $region141: #{tpu_custom_call.1} parent=137 // loop_header_branch
              %334 = sbr.rel (%p332) target = $region145
            $region142: #{tpu_custom_call.1} parent=137 // loop_body
              %v338 = vld [vmem:[%s336] sm:%s329]
              %339 = vst [vmem:[%s337] sm:%s329] %v338
            $region143: #{tpu_custom_call.1} parent=137 // loop_footer
              %s335 = sadd.s32 1, %s331
            $region144: #{tpu_custom_call.1} parent=137 // loop_footer_branch
              %330 = sbr.rel target = $region140
            $region145: #{tpu_custom_call.1} parent=137 // loop_exit
              _
          $region138: #{tpu_custom_call.1} parent=39 // pred_fallthru
            _
          // Predicated region
          $region157: #{tpu_custom_call.1} parent=39 // pred_check
            _
          $region158: #{tpu_custom_call.1} parent=39 // pred_check_branch
            %356 = sbr.rel (0) target = $region160
          $region159: #{tpu_custom_call.1} parent=39 // pred_region
            %357 = vsyncadd %s323, 16
          $region160: #{tpu_custom_call.1} parent=39 // pred_fallthru
            _
          %s358 = sld [smem:[#allocation5 + $0x4]]
          %s359 = scalar_lea.vmem %s1, %s358
          %s360 = scalar_lea.vmem [#allocation2], 4
          %s361 = scalar_lea.sflag [#allocation3], 4
          // Predicated region
          $region161: #{tpu_custom_call.1} parent=39 // pred_check
            _
          $region162: #{tpu_custom_call.1} parent=39 // pred_check_branch
            %363 = sbr.rel target = $region164
          $region163: #{tpu_custom_call.1} parent=39 // pred_region
            // Predicated region
            $region176: #{tpu_custom_call.1} parent=163 // pred_check
              _
            $region177: #{tpu_custom_call.1} parent=163 // pred_check_branch
              %379 = sbr.rel (0) target = $region179
            $region178: #{tpu_custom_call.1} parent=163 // pred_region
              %s381 = ssub.s32 2, 1
              loop: start=0, step=1, limit=1
              $region180: #{tpu_custom_call.1} parent=178 // loop_pre_header
                _
              $region181: #{tpu_custom_call.1} parent=178 // loop_header
                %s383 = sphi 0, %s387
                %p384 = scmp.ge.s32.totalorder %s383, 1
                %s388 = sphi %s359, %s359
                %s389 = sphi %s360, %s360
              $region182: #{tpu_custom_call.1} parent=178 // loop_header_branch
                %386 = sbr.rel (%p384) target = $region186
              $region183: #{tpu_custom_call.1} parent=178 // loop_body
                %v390 = vld [vmem:[%s388] sm:%s381]
                %391 = vst [vmem:[%s389] sm:%s381] %v390
              $region184: #{tpu_custom_call.1} parent=178 // loop_footer
                %s387 = sadd.s32 1, %s383
              $region185: #{tpu_custom_call.1} parent=178 // loop_footer_branch
                %382 = sbr.rel target = $region181
              $region186: #{tpu_custom_call.1} parent=178 // loop_exit
                _
            $region179: #{tpu_custom_call.1} parent=163 // pred_fallthru
              _
          $region164: #{tpu_custom_call.1} parent=39 // pred_fallthru
            _
          // Predicated region
          $region165: #{tpu_custom_call.1} parent=39 // pred_check
            _
          $region166: #{tpu_custom_call.1} parent=39 // pred_check_branch
            %365 = sbr.rel (0) target = $region168
          $region167: #{tpu_custom_call.1} parent=39 // pred_region
            %s367 = ssub.s32 2, 1
            loop: start=0, step=1, limit=1
            $region169: #{tpu_custom_call.1} parent=167 // loop_pre_header
              _
            $region170: #{tpu_custom_call.1} parent=167 // loop_header
              %s369 = sphi 0, %s373
              %p370 = scmp.ge.s32.totalorder %s369, 1
              %s374 = sphi %s359, %s359
              %s375 = sphi %s360, %s360
            $region171: #{tpu_custom_call.1} parent=167 // loop_header_branch
              %372 = sbr.rel (%p370) target = $region175
            $region172: #{tpu_custom_call.1} parent=167 // loop_body
              %v376 = vld [vmem:[%s374] sm:%s367]
              %377 = vst [vmem:[%s375] sm:%s367] %v376
            $region173: #{tpu_custom_call.1} parent=167 // loop_footer
              %s373 = sadd.s32 1, %s369
            $region174: #{tpu_custom_call.1} parent=167 // loop_footer_branch
              %368 = sbr.rel target = $region170
            $region175: #{tpu_custom_call.1} parent=167 // loop_exit
              _
          $region168: #{tpu_custom_call.1} parent=39 // pred_fallthru
            _
          // Predicated region
          $region187: #{tpu_custom_call.1} parent=39 // pred_check
            _
          $region188: #{tpu_custom_call.1} parent=39 // pred_check_branch
            %394 = sbr.rel (0) target = $region190
          $region189: #{tpu_custom_call.1} parent=39 // pred_region
            %395 = vsyncadd %s361, 16
          $region190: #{tpu_custom_call.1} parent=39 // pred_fallthru
            _
          %s396 = sld [smem:[#allocation5 + $0x5]]
          %s397 = scalar_lea.vmem %s1, %s396
          %s398 = scalar_lea.vmem [#allocation2], 5
          %s399 = scalar_lea.sflag [#allocation3], 5
          // Predicated region
          $region191: #{tpu_custom_call.1} parent=39 // pred_check
            _
          $region192: #{tpu_custom_call.1} parent=39 // pred_check_branch
            %401 = sbr.rel target = $region194
          $region193: #{tpu_custom_call.1} parent=39 // pred_region
            // Predicated region
            $region206: #{tpu_custom_call.1} parent=193 // pred_check
              _
            $region207: #{tpu_custom_call.1} parent=193 // pred_check_branch
              %417 = sbr.rel (0) target = $region209
            $region208: #{tpu_custom_call.1} parent=193 // pred_region
              %s419 = ssub.s32 2, 1
              loop: start=0, step=1, limit=1
              $region210: #{tpu_custom_call.1} parent=208 // loop_pre_header
                _
              $region211: #{tpu_custom_call.1} parent=208 // loop_header
                %s421 = sphi 0, %s425
                %p422 = scmp.ge.s32.totalorder %s421, 1
                %s426 = sphi %s397, %s397
                %s427 = sphi %s398, %s398
              $region212: #{tpu_custom_call.1} parent=208 // loop_header_branch
                %424 = sbr.rel (%p422) target = $region216
              $region213: #{tpu_custom_call.1} parent=208 // loop_body
                %v428 = vld [vmem:[%s426] sm:%s419]
                %429 = vst [vmem:[%s427] sm:%s419] %v428
              $region214: #{tpu_custom_call.1} parent=208 // loop_footer
                %s425 = sadd.s32 1, %s421
              $region215: #{tpu_custom_call.1} parent=208 // loop_footer_branch
                %420 = sbr.rel target = $region211
              $region216: #{tpu_custom_call.1} parent=208 // loop_exit
                _
            $region209: #{tpu_custom_call.1} parent=193 // pred_fallthru
              _
          $region194: #{tpu_custom_call.1} parent=39 // pred_fallthru
            _
          // Predicated region
          $region195: #{tpu_custom_call.1} parent=39 // pred_check
            _
          $region196: #{tpu_custom_call.1} parent=39 // pred_check_branch
            %403 = sbr.rel (0) target = $region198
          $region197: #{tpu_custom_call.1} parent=39 // pred_region
            %s405 = ssub.s32 2, 1
            loop: start=0, step=1, limit=1
            $region199: #{tpu_custom_call.1} parent=197 // loop_pre_header
              _
            $region200: #{tpu_custom_call.1} parent=197 // loop_header
              %s407 = sphi 0, %s411
              %p408 = scmp.ge.s32.totalorder %s407, 1
              %s412 = sphi %s397, %s397
              %s413 = sphi %s398, %s398
            $region201: #{tpu_custom_call.1} parent=197 // loop_header_branch
              %410 = sbr.rel (%p408) target = $region205
            $region202: #{tpu_custom_call.1} parent=197 // loop_body
              %v414 = vld [vmem:[%s412] sm:%s405]
              %415 = vst [vmem:[%s413] sm:%s405] %v414
            $region203: #{tpu_custom_call.1} parent=197 // loop_footer
              %s411 = sadd.s32 1, %s407
            $region204: #{tpu_custom_call.1} parent=197 // loop_footer_branch
              %406 = sbr.rel target = $region200
            $region205: #{tpu_custom_call.1} parent=197 // loop_exit
              _
          $region198: #{tpu_custom_call.1} parent=39 // pred_fallthru
            _
          // Predicated region
          $region217: #{tpu_custom_call.1} parent=39 // pred_check
            _
          $region218: #{tpu_custom_call.1} parent=39 // pred_check_branch
            %432 = sbr.rel (0) target = $region220
          $region219: #{tpu_custom_call.1} parent=39 // pred_region
            %433 = vsyncadd %s399, 16
          $region220: #{tpu_custom_call.1} parent=39 // pred_fallthru
            _
          %s434 = sld [smem:[#allocation5 + $0x6]]
          %s435 = scalar_lea.vmem %s1, %s434
          %s436 = scalar_lea.vmem [#allocation2], 6
          %s437 = scalar_lea.sflag [#allocation3], 6
          // Predicated region
          $region221: #{tpu_custom_call.1} parent=39 // pred_check
            _
          $region222: #{tpu_custom_call.1} parent=39 // pred_check_branch
            %439 = sbr.rel target = $region224
          $region223: #{tpu_custom_call.1} parent=39 // pred_region
            // Predicated region
            $region236: #{tpu_custom_call.1} parent=223 // pred_check
              _
            $region237: #{tpu_custom_call.1} parent=223 // pred_check_branch
              %455 = sbr.rel (0) target = $region239
            $region238: #{tpu_custom_call.1} parent=223 // pred_region
              %s457 = ssub.s32 2, 1
              loop: start=0, step=1, limit=1
              $region240: #{tpu_custom_call.1} parent=238 // loop_pre_header
                _
              $region241: #{tpu_custom_call.1} parent=238 // loop_header
                %s459 = sphi 0, %s463
                %p460 = scmp.ge.s32.totalorder %s459, 1
                %s464 = sphi %s435, %s435
                %s465 = sphi %s436, %s436
              $region242: #{tpu_custom_call.1} parent=238 // loop_header_branch
                %462 = sbr.rel (%p460) target = $region246
              $region243: #{tpu_custom_call.1} parent=238 // loop_body
                %v466 = vld [vmem:[%s464] sm:%s457]
                %467 = vst [vmem:[%s465] sm:%s457] %v466
              $region244: #{tpu_custom_call.1} parent=238 // loop_footer
                %s463 = sadd.s32 1, %s459
              $region245: #{tpu_custom_call.1} parent=238 // loop_footer_branch
                %458 = sbr.rel target = $region241
              $region246: #{tpu_custom_call.1} parent=238 // loop_exit
                _
            $region239: #{tpu_custom_call.1} parent=223 // pred_fallthru
              _
          $region224: #{tpu_custom_call.1} parent=39 // pred_fallthru
            _
          // Predicated region
          $region225: #{tpu_custom_call.1} parent=39 // pred_check
            _
          $region226: #{tpu_custom_call.1} parent=39 // pred_check_branch
            %441 = sbr.rel (0) target = $region228
          $region227: #{tpu_custom_call.1} parent=39 // pred_region
            %s443 = ssub.s32 2, 1
            loop: start=0, step=1, limit=1
            $region229: #{tpu_custom_call.1} parent=227 // loop_pre_header
              _
            $region230: #{tpu_custom_call.1} parent=227 // loop_header
              %s445 = sphi 0, %s449
              %p446 = scmp.ge.s32.totalorder %s445, 1
              %s450 = sphi %s435, %s435
              %s451 = sphi %s436, %s436
            $region231: #{tpu_custom_call.1} parent=227 // loop_header_branch
              %448 = sbr.rel (%p446) target = $region235
            $region232: #{tpu_custom_call.1} parent=227 // loop_body
              %v452 = vld [vmem:[%s450] sm:%s443]
              %453 = vst [vmem:[%s451] sm:%s443] %v452
            $region233: #{tpu_custom_call.1} parent=227 // loop_footer
              %s449 = sadd.s32 1, %s445
            $region234: #{tpu_custom_call.1} parent=227 // loop_footer_branch
              %444 = sbr.rel target = $region230
            $region235: #{tpu_custom_call.1} parent=227 // loop_exit
              _
          $region228: #{tpu_custom_call.1} parent=39 // pred_fallthru
            _
          // Predicated region
          $region247: #{tpu_custom_call.1} parent=39 // pred_check
            _
          $region248: #{tpu_custom_call.1} parent=39 // pred_check_branch
            %470 = sbr.rel (0) target = $region250
          $region249: #{tpu_custom_call.1} parent=39 // pred_region
            %471 = vsyncadd %s437, 16
          $region250: #{tpu_custom_call.1} parent=39 // pred_fallthru
            _
          %s472 = sld [smem:[#allocation5 + $0x7]]
          %s473 = scalar_lea.vmem %s1, %s472
          %s474 = scalar_lea.vmem [#allocation2], 7
          %s475 = scalar_lea.sflag [#allocation3], 7
          // Predicated region
          $region251: #{tpu_custom_call.1} parent=39 // pred_check
            _
          $region252: #{tpu_custom_call.1} parent=39 // pred_check_branch
            %477 = sbr.rel target = $region254
          $region253: #{tpu_custom_call.1} parent=39 // pred_region
            // Predicated region
            $region266: #{tpu_custom_call.1} parent=253 // pred_check
              _
            $region267: #{tpu_custom_call.1} parent=253 // pred_check_branch
              %493 = sbr.rel (0) target = $region269
            $region268: #{tpu_custom_call.1} parent=253 // pred_region
              %s495 = ssub.s32 2, 1
              loop: start=0, step=1, limit=1
              $region270: #{tpu_custom_call.1} parent=268 // loop_pre_header
                _
              $region271: #{tpu_custom_call.1} parent=268 // loop_header
                %s497 = sphi 0, %s501
                %p498 = scmp.ge.s32.totalorder %s497, 1
                %s502 = sphi %s473, %s473
                %s503 = sphi %s474, %s474
              $region272: #{tpu_custom_call.1} parent=268 // loop_header_branch
                %500 = sbr.rel (%p498) target = $region276
              $region273: #{tpu_custom_call.1} parent=268 // loop_body
                %v504 = vld [vmem:[%s502] sm:%s495]
                %505 = vst [vmem:[%s503] sm:%s495] %v504
              $region274: #{tpu_custom_call.1} parent=268 // loop_footer
                %s501 = sadd.s32 1, %s497
              $region275: #{tpu_custom_call.1} parent=268 // loop_footer_branch
                %496 = sbr.rel target = $region271
              $region276: #{tpu_custom_call.1} parent=268 // loop_exit
                _
            $region269: #{tpu_custom_call.1} parent=253 // pred_fallthru
              _
          $region254: #{tpu_custom_call.1} parent=39 // pred_fallthru
            _
          // Predicated region
          $region255: #{tpu_custom_call.1} parent=39 // pred_check
            _
          $region256: #{tpu_custom_call.1} parent=39 // pred_check_branch
            %479 = sbr.rel (0) target = $region258
          $region257: #{tpu_custom_call.1} parent=39 // pred_region
            %s481 = ssub.s32 2, 1
            loop: start=0, step=1, limit=1
            $region259: #{tpu_custom_call.1} parent=257 // loop_pre_header
              _
            $region260: #{tpu_custom_call.1} parent=257 // loop_header
              %s483 = sphi 0, %s487
              %p484 = scmp.ge.s32.totalorder %s483, 1
              %s488 = sphi %s473, %s473
              %s489 = sphi %s474, %s474
            $region261: #{tpu_custom_call.1} parent=257 // loop_header_branch
              %486 = sbr.rel (%p484) target = $region265
            $region262: #{tpu_custom_call.1} parent=257 // loop_body
              %v490 = vld [vmem:[%s488] sm:%s481]
              %491 = vst [vmem:[%s489] sm:%s481] %v490
            $region263: #{tpu_custom_call.1} parent=257 // loop_footer
              %s487 = sadd.s32 1, %s483
            $region264: #{tpu_custom_call.1} parent=257 // loop_footer_branch
              %482 = sbr.rel target = $region260
            $region265: #{tpu_custom_call.1} parent=257 // loop_exit
              _
          $region258: #{tpu_custom_call.1} parent=39 // pred_fallthru
            _
          // Predicated region
          $region277: #{tpu_custom_call.1} parent=39 // pred_check
            _
          $region278: #{tpu_custom_call.1} parent=39 // pred_check_branch
            %508 = sbr.rel (0) target = $region280
          $region279: #{tpu_custom_call.1} parent=39 // pred_region
            %509 = vsyncadd %s475, 16
          $region280: #{tpu_custom_call.1} parent=39 // pred_fallthru
            _
        $region40: #{tpu_custom_call.1} parent=35 // pred_fallthru
          _
        %s510 = sadd.s32 %s28, 1
        %p511 = scmp.lt.s32.totalorder %s510, 2
        // Predicated region
        $region281: #{tpu_custom_call.1} parent=35 // pred_check
          %p512 = pneg %p511
        $region282: #{tpu_custom_call.1} parent=35 // pred_check_branch
          %514 = sbr.rel (%p512) target = $region284
        $region283: #{tpu_custom_call.1} parent=35 // pred_region
          %s515 = ssub.s32 1, %s203
          %s516 = smul.u32 %s510, 8
          %s517 = sld [smem:[#allocation5 + %s516]]
          %s518 = smul.u32 %s515, 8
          %s519 = scalar_lea.vmem %s1, %s517
          %s520 = scalar_lea.vmem [#allocation2], %s518
          %s521 = scalar_lea.sflag [#allocation3], %s518
          // Predicated region
          $region285: #{tpu_custom_call.1} parent=283 // pred_check
            _
          $region286: #{tpu_custom_call.1} parent=283 // pred_check_branch
            %523 = sbr.rel target = $region288
          $region287: #{tpu_custom_call.1} parent=283 // pred_region
            // Predicated region
            $region300: #{tpu_custom_call.1} parent=287 // pred_check
              _
            $region301: #{tpu_custom_call.1} parent=287 // pred_check_branch
              %539 = sbr.rel (0) target = $region303
            $region302: #{tpu_custom_call.1} parent=287 // pred_region
              %s541 = ssub.s32 2, 1
              loop: start=0, step=1, limit=1
              $region304: #{tpu_custom_call.1} parent=302 // loop_pre_header
                _
              $region305: #{tpu_custom_call.1} parent=302 // loop_header
                %s543 = sphi 0, %s547
                %p544 = scmp.ge.s32.totalorder %s543, 1
                %s548 = sphi %s519, %s519
                %s549 = sphi %s520, %s520
              $region306: #{tpu_custom_call.1} parent=302 // loop_header_branch
                %546 = sbr.rel (%p544) target = $region310
              $region307: #{tpu_custom_call.1} parent=302 // loop_body
                %v550 = vld [vmem:[%s548] sm:%s541]
                %551 = vst [vmem:[%s549] sm:%s541] %v550
              $region308: #{tpu_custom_call.1} parent=302 // loop_footer
                %s547 = sadd.s32 1, %s543
              $region309: #{tpu_custom_call.1} parent=302 // loop_footer_branch
                %542 = sbr.rel target = $region305
              $region310: #{tpu_custom_call.1} parent=302 // loop_exit
                _
            $region303: #{tpu_custom_call.1} parent=287 // pred_fallthru
              _
          $region288: #{tpu_custom_call.1} parent=283 // pred_fallthru
            _
          // Predicated region
          $region289: #{tpu_custom_call.1} parent=283 // pred_check
            _
          $region290: #{tpu_custom_call.1} parent=283 // pred_check_branch
            %525 = sbr.rel (0) target = $region292
          $region291: #{tpu_custom_call.1} parent=283 // pred_region
            %s527 = ssub.s32 2, 1
            loop: start=0, step=1, limit=1
            $region293: #{tpu_custom_call.1} parent=291 // loop_pre_header
              _
            $region294: #{tpu_custom_call.1} parent=291 // loop_header
              %s529 = sphi 0, %s533
              %p530 = scmp.ge.s32.totalorder %s529, 1
              %s534 = sphi %s519, %s519
              %s535 = sphi %s520, %s520
            $region295: #{tpu_custom_call.1} parent=291 // loop_header_branch
              %532 = sbr.rel (%p530) target = $region299
            $region296: #{tpu_custom_call.1} parent=291 // loop_body
              %v536 = vld [vmem:[%s534] sm:%s527]
              %537 = vst [vmem:[%s535] sm:%s527] %v536
            $region297: #{tpu_custom_call.1} parent=291 // loop_footer
              %s533 = sadd.s32 1, %s529
            $region298: #{tpu_custom_call.1} parent=291 // loop_footer_branch
              %528 = sbr.rel target = $region294
            $region299: #{tpu_custom_call.1} parent=291 // loop_exit
              _
          $region292: #{tpu_custom_call.1} parent=283 // pred_fallthru
            _
          // Predicated region
          $region311: #{tpu_custom_call.1} parent=283 // pred_check
            _
          $region312: #{tpu_custom_call.1} parent=283 // pred_check_branch
            %554 = sbr.rel (0) target = $region314
          $region313: #{tpu_custom_call.1} parent=283 // pred_region
            %555 = vsyncadd %s521, 16
          $region314: #{tpu_custom_call.1} parent=283 // pred_fallthru
            _
          %s556 = sadd.s32 %s516, 1
          %s557 = sld [smem:[#allocation5 + %s556]]
          %s558 = sadd.s32 %s518, 1
          %s559 = scalar_lea.vmem %s1, %s557
          %s560 = scalar_lea.vmem [#allocation2], %s558
          %s561 = scalar_lea.sflag [#allocation3], %s558
          // Predicated region
          $region315: #{tpu_custom_call.1} parent=283 // pred_check
            _
          $region316: #{tpu_custom_call.1} parent=283 // pred_check_branch
            %563 = sbr.rel target = $region318
          $region317: #{tpu_custom_call.1} parent=283 // pred_region
            // Predicated region
            $region330: #{tpu_custom_call.1} parent=317 // pred_check
              _
            $region331: #{tpu_custom_call.1} parent=317 // pred_check_branch
              %579 = sbr.rel (0) target = $region333
            $region332: #{tpu_custom_call.1} parent=317 // pred_region
              %s581 = ssub.s32 2, 1
              loop: start=0, step=1, limit=1
              $region334: #{tpu_custom_call.1} parent=332 // loop_pre_header
                _
              $region335: #{tpu_custom_call.1} parent=332 // loop_header
                %s583 = sphi 0, %s587
                %p584 = scmp.ge.s32.totalorder %s583, 1
                %s588 = sphi %s559, %s559
                %s589 = sphi %s560, %s560
              $region336: #{tpu_custom_call.1} parent=332 // loop_header_branch
                %586 = sbr.rel (%p584) target = $region340
              $region337: #{tpu_custom_call.1} parent=332 // loop_body
                %v590 = vld [vmem:[%s588] sm:%s581]
                %591 = vst [vmem:[%s589] sm:%s581] %v590
              $region338: #{tpu_custom_call.1} parent=332 // loop_footer
                %s587 = sadd.s32 1, %s583
              $region339: #{tpu_custom_call.1} parent=332 // loop_footer_branch
                %582 = sbr.rel target = $region335
              $region340: #{tpu_custom_call.1} parent=332 // loop_exit
                _
            $region333: #{tpu_custom_call.1} parent=317 // pred_fallthru
              _
          $region318: #{tpu_custom_call.1} parent=283 // pred_fallthru
            _
          // Predicated region
          $region319: #{tpu_custom_call.1} parent=283 // pred_check
            _
          $region320: #{tpu_custom_call.1} parent=283 // pred_check_branch
            %565 = sbr.rel (0) target = $region322
          $region321: #{tpu_custom_call.1} parent=283 // pred_region
            %s567 = ssub.s32 2, 1
            loop: start=0, step=1, limit=1
            $region323: #{tpu_custom_call.1} parent=321 // loop_pre_header
              _
            $region324: #{tpu_custom_call.1} parent=321 // loop_header
              %s569 = sphi 0, %s573
              %p570 = scmp.ge.s32.totalorder %s569, 1
              %s574 = sphi %s559, %s559
              %s575 = sphi %s560, %s560
            $region325: #{tpu_custom_call.1} parent=321 // loop_header_branch
              %572 = sbr.rel (%p570) target = $region329
            $region326: #{tpu_custom_call.1} parent=321 // loop_body
              %v576 = vld [vmem:[%s574] sm:%s567]
              %577 = vst [vmem:[%s575] sm:%s567] %v576
            $region327: #{tpu_custom_call.1} parent=321 // loop_footer
              %s573 = sadd.s32 1, %s569
            $region328: #{tpu_custom_call.1} parent=321 // loop_footer_branch
              %568 = sbr.rel target = $region324
            $region329: #{tpu_custom_call.1} parent=321 // loop_exit
              _
          $region322: #{tpu_custom_call.1} parent=283 // pred_fallthru
            _
          // Predicated region
          $region341: #{tpu_custom_call.1} parent=283 // pred_check
            _
          $region342: #{tpu_custom_call.1} parent=283 // pred_check_branch
            %594 = sbr.rel (0) target = $region344
          $region343: #{tpu_custom_call.1} parent=283 // pred_region
            %595 = vsyncadd %s561, 16
          $region344: #{tpu_custom_call.1} parent=283 // pred_fallthru
            _
          %s596 = sadd.s32 %s516, 2
          %s597 = sld [smem:[#allocation5 + %s596]]
          %s598 = sadd.s32 %s518, 2
          %s599 = scalar_lea.vmem %s1, %s597
          %s600 = scalar_lea.vmem [#allocation2], %s598
          %s601 = scalar_lea.sflag [#allocation3], %s598
          // Predicated region
          $region345: #{tpu_custom_call.1} parent=283 // pred_check
            _
          $region346: #{tpu_custom_call.1} parent=283 // pred_check_branch
            %603 = sbr.rel target = $region348
          $region347: #{tpu_custom_call.1} parent=283 // pred_region
            // Predicated region
            $region360: #{tpu_custom_call.1} parent=347 // pred_check
              _
            $region361: #{tpu_custom_call.1} parent=347 // pred_check_branch
              %619 = sbr.rel (0) target = $region363
            $region362: #{tpu_custom_call.1} parent=347 // pred_region
              %s621 = ssub.s32 2, 1
              loop: start=0, step=1, limit=1
              $region364: #{tpu_custom_call.1} parent=362 // loop_pre_header
                _
              $region365: #{tpu_custom_call.1} parent=362 // loop_header
                %s623 = sphi 0, %s627
                %p624 = scmp.ge.s32.totalorder %s623, 1
                %s628 = sphi %s599, %s599
                %s629 = sphi %s600, %s600
              $region366: #{tpu_custom_call.1} parent=362 // loop_header_branch
                %626 = sbr.rel (%p624) target = $region370
              $region367: #{tpu_custom_call.1} parent=362 // loop_body
                %v630 = vld [vmem:[%s628] sm:%s621]
                %631 = vst [vmem:[%s629] sm:%s621] %v630
              $region368: #{tpu_custom_call.1} parent=362 // loop_footer
                %s627 = sadd.s32 1, %s623
              $region369: #{tpu_custom_call.1} parent=362 // loop_footer_branch
                %622 = sbr.rel target = $region365
              $region370: #{tpu_custom_call.1} parent=362 // loop_exit
                _
            $region363: #{tpu_custom_call.1} parent=347 // pred_fallthru
              _
          $region348: #{tpu_custom_call.1} parent=283 // pred_fallthru
            _
          // Predicated region
          $region349: #{tpu_custom_call.1} parent=283 // pred_check
            _
          $region350: #{tpu_custom_call.1} parent=283 // pred_check_branch
            %605 = sbr.rel (0) target = $region352
          $region351: #{tpu_custom_call.1} parent=283 // pred_region
            %s607 = ssub.s32 2, 1
            loop: start=0, step=1, limit=1
            $region353: #{tpu_custom_call.1} parent=351 // loop_pre_header
              _
            $region354: #{tpu_custom_call.1} parent=351 // loop_header
              %s609 = sphi 0, %s613
              %p610 = scmp.ge.s32.totalorder %s609, 1
              %s614 = sphi %s599, %s599
              %s615 = sphi %s600, %s600
            $region355: #{tpu_custom_call.1} parent=351 // loop_header_branch
              %612 = sbr.rel (%p610) target = $region359
            $region356: #{tpu_custom_call.1} parent=351 // loop_body
              %v616 = vld [vmem:[%s614] sm:%s607]
              %617 = vst [vmem:[%s615] sm:%s607] %v616
            $region357: #{tpu_custom_call.1} parent=351 // loop_footer
              %s613 = sadd.s32 1, %s609
            $region358: #{tpu_custom_call.1} parent=351 // loop_footer_branch
              %608 = sbr.rel target = $region354
            $region359: #{tpu_custom_call.1} parent=351 // loop_exit
              _
          $region352: #{tpu_custom_call.1} parent=283 // pred_fallthru
            _
          // Predicated region
          $region371: #{tpu_custom_call.1} parent=283 // pred_check
            _
          $region372: #{tpu_custom_call.1} parent=283 // pred_check_branch
            %634 = sbr.rel (0) target = $region374
          $region373: #{tpu_custom_call.1} parent=283 // pred_region
            %635 = vsyncadd %s601, 16
          $region374: #{tpu_custom_call.1} parent=283 // pred_fallthru
            _
          %s636 = sadd.s32 %s516, 3
          %s637 = sld [smem:[#allocation5 + %s636]]
          %s638 = sadd.s32 %s518, 3
          %s639 = scalar_lea.vmem %s1, %s637
          %s640 = scalar_lea.vmem [#allocation2], %s638
          %s641 = scalar_lea.sflag [#allocation3], %s638
          // Predicated region
          $region375: #{tpu_custom_call.1} parent=283 // pred_check
            _
          $region376: #{tpu_custom_call.1} parent=283 // pred_check_branch
            %643 = sbr.rel target = $region378
          $region377: #{tpu_custom_call.1} parent=283 // pred_region
            // Predicated region
            $region390: #{tpu_custom_call.1} parent=377 // pred_check
              _
            $region391: #{tpu_custom_call.1} parent=377 // pred_check_branch
              %659 = sbr.rel (0) target = $region393
            $region392: #{tpu_custom_call.1} parent=377 // pred_region
              %s661 = ssub.s32 2, 1
              loop: start=0, step=1, limit=1
              $region394: #{tpu_custom_call.1} parent=392 // loop_pre_header
                _
              $region395: #{tpu_custom_call.1} parent=392 // loop_header
                %s663 = sphi 0, %s667
                %p664 = scmp.ge.s32.totalorder %s663, 1
                %s668 = sphi %s639, %s639
                %s669 = sphi %s640, %s640
              $region396: #{tpu_custom_call.1} parent=392 // loop_header_branch
                %666 = sbr.rel (%p664) target = $region400
              $region397: #{tpu_custom_call.1} parent=392 // loop_body
                %v670 = vld [vmem:[%s668] sm:%s661]
                %671 = vst [vmem:[%s669] sm:%s661] %v670
              $region398: #{tpu_custom_call.1} parent=392 // loop_footer
                %s667 = sadd.s32 1, %s663
              $region399: #{tpu_custom_call.1} parent=392 // loop_footer_branch
                %662 = sbr.rel target = $region395
              $region400: #{tpu_custom_call.1} parent=392 // loop_exit
                _
            $region393: #{tpu_custom_call.1} parent=377 // pred_fallthru
              _
          $region378: #{tpu_custom_call.1} parent=283 // pred_fallthru
            _
          // Predicated region
          $region379: #{tpu_custom_call.1} parent=283 // pred_check
            _
          $region380: #{tpu_custom_call.1} parent=283 // pred_check_branch
            %645 = sbr.rel (0) target = $region382
          $region381: #{tpu_custom_call.1} parent=283 // pred_region
            %s647 = ssub.s32 2, 1
            loop: start=0, step=1, limit=1
            $region383: #{tpu_custom_call.1} parent=381 // loop_pre_header
              _
            $region384: #{tpu_custom_call.1} parent=381 // loop_header
              %s649 = sphi 0, %s653
              %p650 = scmp.ge.s32.totalorder %s649, 1
              %s654 = sphi %s639, %s639
              %s655 = sphi %s640, %s640
            $region385: #{tpu_custom_call.1} parent=381 // loop_header_branch
              %652 = sbr.rel (%p650) target = $region389
            $region386: #{tpu_custom_call.1} parent=381 // loop_body
              %v656 = vld [vmem:[%s654] sm:%s647]
              %657 = vst [vmem:[%s655] sm:%s647] %v656
            $region387: #{tpu_custom_call.1} parent=381 // loop_footer
              %s653 = sadd.s32 1, %s649
            $region388: #{tpu_custom_call.1} parent=381 // loop_footer_branch
              %648 = sbr.rel target = $region384
            $region389: #{tpu_custom_call.1} parent=381 // loop_exit
              _
          $region382: #{tpu_custom_call.1} parent=283 // pred_fallthru
            _
          // Predicated region
          $region401: #{tpu_custom_call.1} parent=283 // pred_check
            _
          $region402: #{tpu_custom_call.1} parent=283 // pred_check_branch
            %674 = sbr.rel (0) target = $region404
          $region403: #{tpu_custom_call.1} parent=283 // pred_region
            %675 = vsyncadd %s641, 16
          $region404: #{tpu_custom_call.1} parent=283 // pred_fallthru
            _
          %s676 = sadd.s32 %s516, 4
          %s677 = sld [smem:[#allocation5 + %s676]]
          %s678 = sadd.s32 %s518, 4
          %s679 = scalar_lea.vmem %s1, %s677
          %s680 = scalar_lea.vmem [#allocation2], %s678
          %s681 = scalar_lea.sflag [#allocation3], %s678
          // Predicated region
          $region405: #{tpu_custom_call.1} parent=283 // pred_check
            _
          $region406: #{tpu_custom_call.1} parent=283 // pred_check_branch
            %683 = sbr.rel target = $region408
          $region407: #{tpu_custom_call.1} parent=283 // pred_region
            // Predicated region
            $region420: #{tpu_custom_call.1} parent=407 // pred_check
              _
            $region421: #{tpu_custom_call.1} parent=407 // pred_check_branch
              %699 = sbr.rel (0) target = $region423
            $region422: #{tpu_custom_call.1} parent=407 // pred_region
              %s701 = ssub.s32 2, 1
              loop: start=0, step=1, limit=1
              $region424: #{tpu_custom_call.1} parent=422 // loop_pre_header
                _
              $region425: #{tpu_custom_call.1} parent=422 // loop_header
                %s703 = sphi 0, %s707
                %p704 = scmp.ge.s32.totalorder %s703, 1
                %s708 = sphi %s679, %s679
                %s709 = sphi %s680, %s680
              $region426: #{tpu_custom_call.1} parent=422 // loop_header_branch
                %706 = sbr.rel (%p704) target = $region430
              $region427: #{tpu_custom_call.1} parent=422 // loop_body
                %v710 = vld [vmem:[%s708] sm:%s701]
                %711 = vst [vmem:[%s709] sm:%s701] %v710
              $region428: #{tpu_custom_call.1} parent=422 // loop_footer
                %s707 = sadd.s32 1, %s703
              $region429: #{tpu_custom_call.1} parent=422 // loop_footer_branch
                %702 = sbr.rel target = $region425
              $region430: #{tpu_custom_call.1} parent=422 // loop_exit
                _
            $region423: #{tpu_custom_call.1} parent=407 // pred_fallthru
              _
          $region408: #{tpu_custom_call.1} parent=283 // pred_fallthru
            _
          // Predicated region
          $region409: #{tpu_custom_call.1} parent=283 // pred_check
            _
          $region410: #{tpu_custom_call.1} parent=283 // pred_check_branch
            %685 = sbr.rel (0) target = $region412
          $region411: #{tpu_custom_call.1} parent=283 // pred_region
            %s687 = ssub.s32 2, 1
            loop: start=0, step=1, limit=1
            $region413: #{tpu_custom_call.1} parent=411 // loop_pre_header
              _
            $region414: #{tpu_custom_call.1} parent=411 // loop_header
              %s689 = sphi 0, %s693
              %p690 = scmp.ge.s32.totalorder %s689, 1
              %s694 = sphi %s679, %s679
              %s695 = sphi %s680, %s680
            $region415: #{tpu_custom_call.1} parent=411 // loop_header_branch
              %692 = sbr.rel (%p690) target = $region419
            $region416: #{tpu_custom_call.1} parent=411 // loop_body
              %v696 = vld [vmem:[%s694] sm:%s687]
              %697 = vst [vmem:[%s695] sm:%s687] %v696
            $region417: #{tpu_custom_call.1} parent=411 // loop_footer
              %s693 = sadd.s32 1, %s689
            $region418: #{tpu_custom_call.1} parent=411 // loop_footer_branch
              %688 = sbr.rel target = $region414
            $region419: #{tpu_custom_call.1} parent=411 // loop_exit
              _
          $region412: #{tpu_custom_call.1} parent=283 // pred_fallthru
            _
          // Predicated region
          $region431: #{tpu_custom_call.1} parent=283 // pred_check
            _
          $region432: #{tpu_custom_call.1} parent=283 // pred_check_branch
            %714 = sbr.rel (0) target = $region434
          $region433: #{tpu_custom_call.1} parent=283 // pred_region
            %715 = vsyncadd %s681, 16
          $region434: #{tpu_custom_call.1} parent=283 // pred_fallthru
            _
          %s716 = sadd.s32 %s516, 5
          %s717 = sld [smem:[#allocation5 + %s716]]
          %s718 = sadd.s32 %s518, 5
          %s719 = scalar_lea.vmem %s1, %s717
          %s720 = scalar_lea.vmem [#allocation2], %s718
          %s721 = scalar_lea.sflag [#allocation3], %s718
          // Predicated region
          $region435: #{tpu_custom_call.1} parent=283 // pred_check
            _
          $region436: #{tpu_custom_call.1} parent=283 // pred_check_branch
            %723 = sbr.rel target = $region438
          $region437: #{tpu_custom_call.1} parent=283 // pred_region
            // Predicated region
            $region450: #{tpu_custom_call.1} parent=437 // pred_check
              _
            $region451: #{tpu_custom_call.1} parent=437 // pred_check_branch
              %739 = sbr.rel (0) target = $region453
            $region452: #{tpu_custom_call.1} parent=437 // pred_region
              %s741 = ssub.s32 2, 1
              loop: start=0, step=1, limit=1
              $region454: #{tpu_custom_call.1} parent=452 // loop_pre_header
                _
              $region455: #{tpu_custom_call.1} parent=452 // loop_header
                %s743 = sphi 0, %s747
                %p744 = scmp.ge.s32.totalorder %s743, 1
                %s748 = sphi %s719, %s719
                %s749 = sphi %s720, %s720
              $region456: #{tpu_custom_call.1} parent=452 // loop_header_branch
                %746 = sbr.rel (%p744) target = $region460
              $region457: #{tpu_custom_call.1} parent=452 // loop_body
                %v750 = vld [vmem:[%s748] sm:%s741]
                %751 = vst [vmem:[%s749] sm:%s741] %v750
              $region458: #{tpu_custom_call.1} parent=452 // loop_footer
                %s747 = sadd.s32 1, %s743
              $region459: #{tpu_custom_call.1} parent=452 // loop_footer_branch
                %742 = sbr.rel target = $region455
              $region460: #{tpu_custom_call.1} parent=452 // loop_exit
                _
            $region453: #{tpu_custom_call.1} parent=437 // pred_fallthru
              _
          $region438: #{tpu_custom_call.1} parent=283 // pred_fallthru
            _
          // Predicated region
          $region439: #{tpu_custom_call.1} parent=283 // pred_check
            _
          $region440: #{tpu_custom_call.1} parent=283 // pred_check_branch
            %725 = sbr.rel (0) target = $region442
          $region441: #{tpu_custom_call.1} parent=283 // pred_region
            %s727 = ssub.s32 2, 1
            loop: start=0, step=1, limit=1
            $region443: #{tpu_custom_call.1} parent=441 // loop_pre_header
              _
            $region444: #{tpu_custom_call.1} parent=441 // loop_header
              %s729 = sphi 0, %s733
              %p730 = scmp.ge.s32.totalorder %s729, 1
              %s734 = sphi %s719, %s719
              %s735 = sphi %s720, %s720
            $region445: #{tpu_custom_call.1} parent=441 // loop_header_branch
              %732 = sbr.rel (%p730) target = $region449
            $region446: #{tpu_custom_call.1} parent=441 // loop_body
              %v736 = vld [vmem:[%s734] sm:%s727]
              %737 = vst [vmem:[%s735] sm:%s727] %v736
            $region447: #{tpu_custom_call.1} parent=441 // loop_footer
              %s733 = sadd.s32 1, %s729
            $region448: #{tpu_custom_call.1} parent=441 // loop_footer_branch
              %728 = sbr.rel target = $region444
            $region449: #{tpu_custom_call.1} parent=441 // loop_exit
              _
          $region442: #{tpu_custom_call.1} parent=283 // pred_fallthru
            _
          // Predicated region
          $region461: #{tpu_custom_call.1} parent=283 // pred_check
            _
          $region462: #{tpu_custom_call.1} parent=283 // pred_check_branch
            %754 = sbr.rel (0) target = $region464
          $region463: #{tpu_custom_call.1} parent=283 // pred_region
            %755 = vsyncadd %s721, 16
          $region464: #{tpu_custom_call.1} parent=283 // pred_fallthru
            _
          %s756 = sadd.s32 %s516, 6
          %s757 = sld [smem:[#allocation5 + %s756]]
          %s758 = sadd.s32 %s518, 6
          %s759 = scalar_lea.vmem %s1, %s757
          %s760 = scalar_lea.vmem [#allocation2], %s758
          %s761 = scalar_lea.sflag [#allocation3], %s758
          // Predicated region
          $region465: #{tpu_custom_call.1} parent=283 // pred_check
            _
          $region466: #{tpu_custom_call.1} parent=283 // pred_check_branch
            %763 = sbr.rel target = $region468
          $region467: #{tpu_custom_call.1} parent=283 // pred_region
            // Predicated region
            $region480: #{tpu_custom_call.1} parent=467 // pred_check
              _
            $region481: #{tpu_custom_call.1} parent=467 // pred_check_branch
              %779 = sbr.rel (0) target = $region483
            $region482: #{tpu_custom_call.1} parent=467 // pred_region
              %s781 = ssub.s32 2, 1
              loop: start=0, step=1, limit=1
              $region484: #{tpu_custom_call.1} parent=482 // loop_pre_header
                _
              $region485: #{tpu_custom_call.1} parent=482 // loop_header
                %s783 = sphi 0, %s787
                %p784 = scmp.ge.s32.totalorder %s783, 1
                %s788 = sphi %s759, %s759
                %s789 = sphi %s760, %s760
              $region486: #{tpu_custom_call.1} parent=482 // loop_header_branch
                %786 = sbr.rel (%p784) target = $region490
              $region487: #{tpu_custom_call.1} parent=482 // loop_body
                %v790 = vld [vmem:[%s788] sm:%s781]
                %791 = vst [vmem:[%s789] sm:%s781] %v790
              $region488: #{tpu_custom_call.1} parent=482 // loop_footer
                %s787 = sadd.s32 1, %s783
              $region489: #{tpu_custom_call.1} parent=482 // loop_footer_branch
                %782 = sbr.rel target = $region485
              $region490: #{tpu_custom_call.1} parent=482 // loop_exit
                _
            $region483: #{tpu_custom_call.1} parent=467 // pred_fallthru
              _
          $region468: #{tpu_custom_call.1} parent=283 // pred_fallthru
            _
          // Predicated region
          $region469: #{tpu_custom_call.1} parent=283 // pred_check
            _
          $region470: #{tpu_custom_call.1} parent=283 // pred_check_branch
            %765 = sbr.rel (0) target = $region472
          $region471: #{tpu_custom_call.1} parent=283 // pred_region
            %s767 = ssub.s32 2, 1
            loop: start=0, step=1, limit=1
            $region473: #{tpu_custom_call.1} parent=471 // loop_pre_header
              _
            $region474: #{tpu_custom_call.1} parent=471 // loop_header
              %s769 = sphi 0, %s773
              %p770 = scmp.ge.s32.totalorder %s769, 1
              %s774 = sphi %s759, %s759
              %s775 = sphi %s760, %s760
            $region475: #{tpu_custom_call.1} parent=471 // loop_header_branch
              %772 = sbr.rel (%p770) target = $region479
            $region476: #{tpu_custom_call.1} parent=471 // loop_body
              %v776 = vld [vmem:[%s774] sm:%s767]
              %777 = vst [vmem:[%s775] sm:%s767] %v776
            $region477: #{tpu_custom_call.1} parent=471 // loop_footer
              %s773 = sadd.s32 1, %s769
            $region478: #{tpu_custom_call.1} parent=471 // loop_footer_branch
              %768 = sbr.rel target = $region474
            $region479: #{tpu_custom_call.1} parent=471 // loop_exit
              _
          $region472: #{tpu_custom_call.1} parent=283 // pred_fallthru
            _
          // Predicated region
          $region491: #{tpu_custom_call.1} parent=283 // pred_check
            _
          $region492: #{tpu_custom_call.1} parent=283 // pred_check_branch
            %794 = sbr.rel (0) target = $region494
          $region493: #{tpu_custom_call.1} parent=283 // pred_region
            %795 = vsyncadd %s761, 16
          $region494: #{tpu_custom_call.1} parent=283 // pred_fallthru
            _
          %s796 = sadd.s32 %s516, 7
          %s797 = sld [smem:[#allocation5 + %s796]]
          %s798 = sadd.s32 %s518, 7
          %s799 = scalar_lea.vmem %s1, %s797
          %s800 = scalar_lea.vmem [#allocation2], %s798
          %s801 = scalar_lea.sflag [#allocation3], %s798
          // Predicated region
          $region495: #{tpu_custom_call.1} parent=283 // pred_check
            _
          $region496: #{tpu_custom_call.1} parent=283 // pred_check_branch
            %803 = sbr.rel target = $region498
          $region497: #{tpu_custom_call.1} parent=283 // pred_region
            // Predicated region
            $region510: #{tpu_custom_call.1} parent=497 // pred_check
              _
            $region511: #{tpu_custom_call.1} parent=497 // pred_check_branch
              %819 = sbr.rel (0) target = $region513
            $region512: #{tpu_custom_call.1} parent=497 // pred_region
              %s821 = ssub.s32 2, 1
              loop: start=0, step=1, limit=1
              $region514: #{tpu_custom_call.1} parent=512 // loop_pre_header
                _
              $region515: #{tpu_custom_call.1} parent=512 // loop_header
                %s823 = sphi 0, %s827
                %p824 = scmp.ge.s32.totalorder %s823, 1
                %s828 = sphi %s799, %s799
                %s829 = sphi %s800, %s800
              $region516: #{tpu_custom_call.1} parent=512 // loop_header_branch
                %826 = sbr.rel (%p824) target = $region520
              $region517: #{tpu_custom_call.1} parent=512 // loop_body
                %v830 = vld [vmem:[%s828] sm:%s821]
                %831 = vst [vmem:[%s829] sm:%s821] %v830
              $region518: #{tpu_custom_call.1} parent=512 // loop_footer
                %s827 = sadd.s32 1, %s823
              $region519: #{tpu_custom_call.1} parent=512 // loop_footer_branch
                %822 = sbr.rel target = $region515
              $region520: #{tpu_custom_call.1} parent=512 // loop_exit
                _
            $region513: #{tpu_custom_call.1} parent=497 // pred_fallthru
              _
          $region498: #{tpu_custom_call.1} parent=283 // pred_fallthru
            _
          // Predicated region
          $region499: #{tpu_custom_call.1} parent=283 // pred_check
            _
          $region500: #{tpu_custom_call.1} parent=283 // pred_check_branch
            %805 = sbr.rel (0) target = $region502
          $region501: #{tpu_custom_call.1} parent=283 // pred_region
            %s807 = ssub.s32 2, 1
            loop: start=0, step=1, limit=1
            $region503: #{tpu_custom_call.1} parent=501 // loop_pre_header
              _
            $region504: #{tpu_custom_call.1} parent=501 // loop_header
              %s809 = sphi 0, %s813
              %p810 = scmp.ge.s32.totalorder %s809, 1
              %s814 = sphi %s799, %s799
              %s815 = sphi %s800, %s800
            $region505: #{tpu_custom_call.1} parent=501 // loop_header_branch
              %812 = sbr.rel (%p810) target = $region509
            $region506: #{tpu_custom_call.1} parent=501 // loop_body
              %v816 = vld [vmem:[%s814] sm:%s807]
              %817 = vst [vmem:[%s815] sm:%s807] %v816
            $region507: #{tpu_custom_call.1} parent=501 // loop_footer
              %s813 = sadd.s32 1, %s809
            $region508: #{tpu_custom_call.1} parent=501 // loop_footer_branch
              %808 = sbr.rel target = $region504
            $region509: #{tpu_custom_call.1} parent=501 // loop_exit
              _
          $region502: #{tpu_custom_call.1} parent=283 // pred_fallthru
            _
          // Predicated region
          $region521: #{tpu_custom_call.1} parent=283 // pred_check
            _
          $region522: #{tpu_custom_call.1} parent=283 // pred_check_branch
            %834 = sbr.rel (0) target = $region524
          $region523: #{tpu_custom_call.1} parent=283 // pred_region
            %835 = vsyncadd %s801, 16
          $region524: #{tpu_custom_call.1} parent=283 // pred_fallthru
            _
        $region284: #{tpu_custom_call.1} parent=35 // pred_fallthru
          _
        %s836 = smul.u32 %s203, 8
        %s837 = scalar_lea.sflag [#allocation3], %s836
        %s838 = smul.u32 1, 1
        %s839 = sshll.u32 %s838, 4
        %840 = dma.done %s837, %s839
        %s841 = sadd.s32 %s836, 1
        %s842 = scalar_lea.sflag [#allocation3], %s841
        %s843 = sshll.u32 %s838, 4
        %844 = dma.done %s842, %s843
        %s845 = sadd.s32 %s836, 2
        %s846 = scalar_lea.sflag [#allocation3], %s845
        %s847 = sshll.u32 %s838, 4
        %848 = dma.done %s846, %s847
        %s849 = sadd.s32 %s836, 3
        %s850 = scalar_lea.sflag [#allocation3], %s849
        %s851 = sshll.u32 %s838, 4
        %852 = dma.done %s850, %s851
        %s853 = sadd.s32 %s836, 4
        %s854 = scalar_lea.sflag [#allocation3], %s853
        %s855 = sshll.u32 %s838, 4
        %856 = dma.done %s854, %s855
        %s857 = sadd.s32 %s836, 5
        %s858 = scalar_lea.sflag [#allocation3], %s857
        %s859 = sshll.u32 %s838, 4
        %860 = dma.done %s858, %s859
        %s861 = sadd.s32 %s836, 6
        %s862 = scalar_lea.sflag [#allocation3], %s861
        %s863 = sshll.u32 %s838, 4
        %864 = dma.done %s862, %s863
        %s865 = sadd.s32 %s836, 7
        %s866 = scalar_lea.sflag [#allocation3], %s865
        %s867 = sshll.u32 %s838, 4
        %868 = dma.done %s866, %s867
        %s869 = scalar_lea.vmem [#allocation2], %s836
        %v870 = vld [vmem:[%s869] sm:$0xff]
        %v871 = vld [vmem:[%s2] sm:$0xff]
        %v872 = vadd.f32 %v870, %v871
        %v873 = vld [vmem:[%s202] sm:$0xff]
        %v874 = vadd.f32 %v872, %v873
        %vm875 = vcmask 261120
        %v876 = vsel %vm875, %v874, 0.0
        %877 = vadd.xlane.f32.xlu0 %v876
        %v878 = vpop.xlane.xlu0 %877
        %v879 = vrcp.pop 32.0
        %v880 = vmul.f32 32.0, %v879
        %v881 = vsub.f32 1.0, %v880
        %v882 = vmul.f32 %v879, %v881
        %v883 = vadd.f32 %v879, %v882
        %vm884 = vweird.f32 %v879
        %v885 = vsel %vm884, %v879, %v883
        %v886 = vmul.f32 %v878, %v885
        %v887 = vsub.f32 %v874, %v886
        %v888 = vmul.f32 %v887, %v887
        %v889 = vsel %vm875, %v888, 0.0
        %890 = vadd.xlane.f32.xlu0 %v889
        %v891 = vpop.xlane.xlu0 %890
        %v892 = vmul.f32 %v891, %v885
        %v893 = vadd.f32 %v892, 1e-12
        %v894 = vrsqrt.pop %v893
        %v895 = vmul.f32 %v894, %v893
        %v896 = vmul.f32 %v895, %v894
        %v897 = vmul.f32 0.5, %v896
        %v898 = vsub.f32 1.5, %v897
        %v899 = vmul.f32 %v894, %v898
        %vm900 = vweird.f32 %v893
        %vm901 = vweird.f32 %v894
        %vm902 = vmor %vm900, %vm901
        %v903 = vsel %vm902, %v894, %v899
        %v904 = vmul.f32 %v887, %v903
        %v905 = vld [vmem:[%s4] sm:$0x1]
        %v907 = vperm.slane %v905, 0
        %v909 = vmul.f32 %v904, %v907
        %v910 = vld [vmem:[%s5] sm:$0x1]
        %v912 = vperm.slane %v910, 0
        %v914 = vadd.f32 %v909, %v912
        %915 = vst.msk [vmem:[%s198] sm:$0xff] %vm875, %v914
        %s916 = sand.u32 %s125, 1
        %s917 = scalar_lea.sflag [#allocation7], %s916
        %s918 = sand.u32 %s125, 1
        %s919 = smul.addr %s918, 8
        %s920 = scalar_lea.vmem [#allocation6], %s919
        // Predicated region
        $region525: #{tpu_custom_call.1} parent=35 // pred_check
          %p921 = pneg %p135
        $region526: #{tpu_custom_call.1} parent=35 // pred_check_branch
          %923 = sbr.rel (%p921) target = $region528
        $region527: #{tpu_custom_call.1} parent=35 // pred_region
          %925 = vsyncadd %s917, 0
          %s926 = smul.addr %s28, 8
          %s927 = scalar_lea.hbm %s6, %s926
          %s929 = sshll.u32 %s920, 4
          %s930 = int_to_ptr.vmem [resolvable:$true] %s929
          %s931 = sshll.u32 %s927, 4
          %s932 = int_to_ptr.hbm [resolvable:$true] %s931
          %934 = dma.vmem_to_hbm [thread:$0]  %s930, 128, %s932, %s917
        $region528: #{tpu_custom_call.1} parent=35 // pred_fallthru
          _
      $region36: #{tpu_custom_call.1} parent=5 // pred_fallthru
        _
      %p935 = scmp.le.s32.totalorder 2, %s23
      // Predicated region
      $region529: #{tpu_custom_call.1} parent=5 // pred_check
        %p936 = pneg %p935
      $region530: #{tpu_custom_call.1} parent=5 // pred_check_branch
        %938 = sbr.rel (%p936) target = $region532
      $region531: #{tpu_custom_call.1} parent=5 // pred_region
        %s939 = ssub.s32 %s23, 2
        // Predicated region
        $region533: #{tpu_custom_call.1} parent=531 // pred_check
          %p940 = pneg %p141
        $region534: #{tpu_custom_call.1} parent=531 // pred_check_branch
          %942 = sbr.rel (%p940) target = $region536
        $region535: #{tpu_custom_call.1} parent=531 // pred_region
          %s943 = sand.u32 %s126, 1
          %s944 = scalar_lea.sflag [#allocation7], %s943
          %s945 = sand.u32 %s126, 1
          %s946 = smul.addr %s945, 8
          %s947 = scalar_lea.vmem [#allocation6], %s946
          %949 = dma.done %s944, 128
        $region536: #{tpu_custom_call.1} parent=531 // pred_fallthru
          _
      $region532: #{tpu_custom_call.1} parent=5 // pred_fallthru
        _
    $region6: #{tpu_custom_call.1} parent=1 // loop_footer
      %s27 = sadd.s32 1, %s23
    $region7: #{tpu_custom_call.1} parent=1 // loop_footer_branch
      %22 = sbr.rel target = $region3
    $region8: #{tpu_custom_call.1} parent=1 // loop_exit
      _
    %950 = vsyncpa [#allocation7], 1
    %s951 = scalar_lea.sflag [#allocation7], 1
    %952 = vsyncpa %s951, 1
  %953 = vsyncmov [#allocation3]
  %s954 = vpop.sfrf %953
  %p955 = scmp.eq.s32.totalorder %s954, 0
  %p956 = pneg %p955
  %958 = shalt.err (%p956)
  %s959 = scalar_lea.sflag [#allocation3], 1
  %960 = vsyncmov %s959
  %s961 = vpop.sfrf %960
  %p962 = scmp.eq.s32.totalorder %s961, 0
  %p963 = pneg %p962
  %965 = shalt.err (%p963)
  %s966 = scalar_lea.sflag [#allocation3], 2
  %967 = vsyncmov %s966
  %s968 = vpop.sfrf %967
  %p969 = scmp.eq.s32.totalorder %s968, 0
  %p970 = pneg %p969
  %972 = shalt.err (%p970)
  %s973 = scalar_lea.sflag [#allocation3], 3
  %974 = vsyncmov %s973
  %s975 = vpop.sfrf %974
  %p976 = scmp.eq.s32.totalorder %s975, 0
  %p977 = pneg %p976
  %979 = shalt.err (%p977)
  %s980 = scalar_lea.sflag [#allocation3], 4
  %981 = vsyncmov %s980
  %s982 = vpop.sfrf %981
  %p983 = scmp.eq.s32.totalorder %s982, 0
  %p984 = pneg %p983
  %986 = shalt.err (%p984)
  %s987 = scalar_lea.sflag [#allocation3], 5
  %988 = vsyncmov %s987
  %s989 = vpop.sfrf %988
  %p990 = scmp.eq.s32.totalorder %s989, 0
  %p991 = pneg %p990
  %993 = shalt.err (%p991)
  %s994 = scalar_lea.sflag [#allocation3], 6
  %995 = vsyncmov %s994
  %s996 = vpop.sfrf %995
  %p997 = scmp.eq.s32.totalorder %s996, 0
  %p998 = pneg %p997
  %1000 = shalt.err (%p998)
  %s1001 = scalar_lea.sflag [#allocation3], 7
  %1002 = vsyncmov %s1001
  %s1003 = vpop.sfrf %1002
  %p1004 = scmp.eq.s32.totalorder %s1003, 0
  %p1005 = pneg %p1004
  %1007 = shalt.err (%p1005)
  %s1008 = scalar_lea.sflag [#allocation3], 8
  %1009 = vsyncmov %s1008
  %s1010 = vpop.sfrf %1009
  %p1011 = scmp.eq.s32.totalorder %s1010, 0
  %p1012 = pneg %p1011
  %1014 = shalt.err (%p1012)
  %s1015 = scalar_lea.sflag [#allocation3], 9
  %1016 = vsyncmov %s1015
  %s1017 = vpop.sfrf %1016
  %p1018 = scmp.eq.s32.totalorder %s1017, 0
  %p1019 = pneg %p1018
  %1021 = shalt.err (%p1019)
  %s1022 = scalar_lea.sflag [#allocation3], 10
  %1023 = vsyncmov %s1022
  %s1024 = vpop.sfrf %1023
  %p1025 = scmp.eq.s32.totalorder %s1024, 0
  %p1026 = pneg %p1025
  %1028 = shalt.err (%p1026)
  %s1029 = scalar_lea.sflag [#allocation3], 11
  %1030 = vsyncmov %s1029
  %s1031 = vpop.sfrf %1030
  %p1032 = scmp.eq.s32.totalorder %s1031, 0
  %p1033 = pneg %p1032
  %1035 = shalt.err (%p1033)
  %s1036 = scalar_lea.sflag [#allocation3], 12
  %1037 = vsyncmov %s1036
  %s1038 = vpop.sfrf %1037
  %p1039 = scmp.eq.s32.totalorder %s1038, 0
  %p1040 = pneg %p1039
  %1042 = shalt.err (%p1040)
  %s1043 = scalar_lea.sflag [#allocation3], 13
  %1044 = vsyncmov %s1043
  %s1045 = vpop.sfrf %1044
  %p1046 = scmp.eq.s32.totalorder %s1045, 0
  %p1047 = pneg %p1046
  %1049 = shalt.err (%p1047)
  %s1050 = scalar_lea.sflag [#allocation3], 14
  %1051 = vsyncmov %s1050
  %s1052 = vpop.sfrf %1051
  %p1053 = scmp.eq.s32.totalorder %s1052, 0
  %p1054 = pneg %p1053
  %1056 = shalt.err (%p1054)
  %s1057 = scalar_lea.sflag [#allocation3], 15
  %1058 = vsyncmov %s1057
  %s1059 = vpop.sfrf %1058
  %p1060 = scmp.eq.s32.totalorder %s1059, 0
  %p1061 = pneg %p1060
  %1063 = shalt.err (%p1061)

</llo_original>
